<compile_context>
chip_gen: v7x
topology: tpu7x:2x2x1
jax: 0.10.0
libtpu: 0.0.40
codegen_flags: <defaults>
</compile_context>

<pallas_src>
import math
import functools

import jax
import jax.numpy as jnp
from jax import lax
from jax.experimental import pallas as pl
from jax.experimental.pallas import tpu as pltpu


# ----------------------------------------------------------------------------
# helpers
# ----------------------------------------------------------------------------

def _round_up(n, m):
    return ((n + m - 1) // m) * m


def _tile(n, max_tile=256):
    """Largest multiple-of-8 tile <= max_tile that divides n (else n itself).
    TODO(synk): ragged n falls back to one full-size block instead of a masked
    remainder tile."""
    if n <= max_tile:
        return n
    t = max_tile - (max_tile % 8)
    while t >= 8:
        if n % t == 0:
            return t
        t -= 8
    return n


def _vmem_limit_bytes():
    """Explicit scoped-VMEM limit: ~8 MiB below physical capacity, capped at 100 MiB
    (=> ~56 MiB on the 64 MiB generation, 100 MiB on 128 MiB generations)."""
    try:
        cap = pltpu.get_tpu_info().vmem_capacity_bytes
    except Exception:
        cap = 64 * 1024 * 1024
    return int(max(32 * 1024 * 1024, min(cap - 8 * 1024 * 1024, 100 * 1024 * 1024)))


@functools.cache
def _single_buffer_supported():
    """Probe whether BlockSpec(pipeline_mode=pl.Buffered(1)) works, so resident
    (grid-invariant) weights can be single-buffered (halves their VMEM footprint)."""
    def probe(x_ref, o_ref):
        o_ref[...] = x_ref[...]
    try:
        with jax.ensure_compile_time_eval():
            spec = pl.BlockSpec((8, 128), lambda i: (0, 0),
                                pipeline_mode=pl.Buffered(1))
            out = pl.pallas_call(
                probe,
                out_shape=jax.ShapeDtypeStruct((8, 128), jnp.float32),
                grid=(1,),
                in_specs=[spec],
                out_specs=pl.BlockSpec((8, 128), lambda i: (0, 0)),
            )(jnp.zeros((8, 128), jnp.float32))
            jax.block_until_ready(out)
        return True
    except Exception:
        return False


def _resident_spec(shape):
    """BlockSpec for a grid-invariant operand (constant index map); single-buffered
    when supported."""
    index_map = lambda *_: (0,) * len(shape)
    if _single_buffer_supported():
        return pl.BlockSpec(shape, index_map, pipeline_mode=pl.Buffered(1))
    return pl.BlockSpec(shape, index_map)


def hamilton_block(w):
    """w: (4, F, O) per-component weights (already (in,out) transposed).
    Returns the (4F, 4O) Hamilton block matrix (component-block ordering)."""
    wr, wi, wj, wk = w[0], w[1], w[2], w[3]
    return jnp.concatenate([
        jnp.concatenate([wr,  wi,  wj,  wk], axis=1),
        jnp.concatenate([-wi, wr, -wk,  wj], axis=1),
        jnp.concatenate([-wj, wk,  wr, -wi], axis=1),
        jnp.concatenate([-wk, -wj, wi,  wr], axis=1),
    ], axis=0)


# ----------------------------------------------------------------------------
# Kernel A: layout permutation + composed rotation + fused QKV projection
# ----------------------------------------------------------------------------

def _rot_qkv_kernel(x_ref, p_ref, rot_ref, w_ref, b_ref,
                    xrot_ref, q_ref, kv_ref, *, Ep, mm_dtype):
    D = 4 * Ep
    # interleaved (.., e*4+c) -> component-block (.., c*Ep+e); also zero-pads E->Ep.
    x_cb = jnp.dot(x_ref[0].astype(mm_dtype), p_ref[...],
                   preferred_element_type=jnp.float32)
    a, b, c, d = rot_ref[0], rot_ref[1], rot_ref[2], rot_ref[3]
    xr = x_cb[:, 0:Ep]
    xi = x_cb[:, Ep:2 * Ep]
    xj = x_cb[:, 2 * Ep:3 * Ep]
    xk = x_cb[:, 3 * Ep:4 * Ep]
    # single quaternion multiply with the precomposed rotation r_tot = r_k (x) r_ij
    rr = a * xr - b * xi - c * xj - d * xk
    ri = b * xr + a * xi - d * xj + c * xk
    rj = c * xr + d * xi + a * xj - b * xk
    rk = d * xr - c * xi + b * xj + a * xk
    xrot = jnp.concatenate([rr, ri, rj, rk], axis=-1)
    xrot_ref[0] = xrot.astype(xrot_ref.dtype)
    qkv = (jnp.dot(xrot.astype(mm_dtype), w_ref[...],
                   preferred_element_type=jnp.float32) + b_ref[...])
    q_ref[0] = qkv[:, 0:D].astype(q_ref.dtype)
    kv_ref[0] = qkv[:, D:3 * D].astype(kv_ref.dtype)


def rot_qkv(x_il, p, rot, w_qkv, b_qkv, *, Ep, act_dtype, mm_dtype):
    B, S, Din = x_il.shape
    D = 4 * Ep
    ts = _tile(S)
    kern = functools.partial(_rot_qkv_kernel, Ep=Ep, mm_dtype=mm_dtype)
    flops = 2 * B * S * Din * D + 6 * B * S * D * D + 28 * B * S * D
    bytes_accessed = 4 * (B * S * (Din + 5 * D) + Din * D + 3 * D * D + S * D)
    return pl.pallas_call(
        kern,
        out_shape=(jax.ShapeDtypeStruct((B, S, D), act_dtype),      # x_rot
                   jax.ShapeDtypeStruct((B, S, D), act_dtype),      # q
                   jax.ShapeDtypeStruct((B, S, 2 * D), act_dtype)), # kv
        grid=(S // ts, B),                     # rot coeffs reused across the inner B axis
        in_specs=[
            pl.BlockSpec((1, ts, Din), lambda s, b: (b, s, 0)),
            _resident_spec((Din, D)),                               # permutation / pad
            pl.BlockSpec((4, ts, Ep), lambda s, b: (0, s, 0)),      # composed rotation
            _resident_spec((D, 3 * D)),                             # fused QKV weight
            _resident_spec((1, 3 * D)),                             # fused QKV bias
        ],
        out_specs=(
            pl.BlockSpec((1, ts, D), lambda s, b: (b, s, 0)),
            pl.BlockSpec((1, ts, D), lambda s, b: (b, s, 0)),
            pl.BlockSpec((1, ts, 2 * D), lambda s, b: (b, s, 0)),
        ),
        compiler_params=pltpu.CompilerParams(
            dimension_semantics=("parallel", "parallel"),
            vmem_limit_bytes=_vmem_limit_bytes()),
        cost_estimate=pl.CostEstimate(flops=flops, transcendentals=0,
                                      bytes_accessed=bytes_accessed),
    )(x_il, p, rot, w_qkv, b_qkv)


# ----------------------------------------------------------------------------
# Kernel B: q-tiled attention + softmax + residual + quaternion layer-norm 1
# ----------------------------------------------------------------------------

def _attn_norm_kernel(q_ref, kv_ref, xrot_ref, g_ref, bt_ref, x1_ref, *w_refs,
                      D, inv_scale, eps, mm_dtype, precise):
    Ep = D // 4
    q = q_ref[0].astype(mm_dtype)            # (tq, D)
    kv = kv_ref[0]                           # (S, 2D), resident per batch
    k = kv[:, 0:D].astype(mm_dtype)
    v = kv[:, D:2 * D].astype(mm_dtype)

    # TODO(synk): attention mask (masked_fill with -inf) not implemented (mask=None).
    scores = lax.dot_general(q, k, (((1,), (1,)), ((), ())),
                             preferred_element_type=jnp.float32) * inv_scale
    m = jnp.max(scores, axis=-1, keepdims=True)
    e = jnp.exp(scores - m)
    denom = jnp.sum(e, axis=-1, keepdims=True)
    w = e * pl.reciprocal(denom, approx=not precise)
    if w_refs:
        w_refs[0][0] = w
    attn = jnp.dot(w.astype(mm_dtype), v, preferred_element_type=jnp.float32)

    t = xrot_ref[0].astype(jnp.float32) + attn
    sq = t * t
    ssum = (sq[:, 0:Ep] + sq[:, Ep:2 * Ep]
            + sq[:, 2 * Ep:3 * Ep] + sq[:, 3 * Ep:4 * Ep]) + eps
    inv = (1.0 / jnp.sqrt(ssum)) if precise else lax.rsqrt(ssum)
    x1 = g_ref[...] * (t * jnp.tile(inv, (1, 4))) + bt_ref[...]
    x1_ref[0] = x1.astype(x1_ref.dtype)


def attn_norm(q, kv, x_rot, gamma, beta, *, embedding_dim, act_dtype, mm_dtype,
              precise, return_weights=True, eps=1e-6):
    B, S, D = q.shape
    tq = _tile(S)
    inv_scale = 1.0 / math.sqrt(embedding_dim * 4)
    kern = functools.partial(_attn_norm_kernel, D=D, inv_scale=inv_scale, eps=eps,
                             mm_dtype=mm_dtype, precise=precise)
    out_shape = [jax.ShapeDtypeStruct((B, S, D), act_dtype)]
    out_specs = [pl.BlockSpec((1, tq, D), lambda b, s: (b, s, 0))]
    if return_weights:
        out_shape.append(jax.ShapeDtypeStruct((B, S, S), jnp.float32))
        out_specs.append(pl.BlockSpec((1, tq, S), lambda b, s: (b, s, 0)))
    flops = 4 * B * S * S * D + 20 * B * S * D
    transcendentals = B * S * S + B * S * D // 4
    bytes_accessed = 4 * (B * S * (5 * D + (S if return_weights else 0)) + 2 * D)
    outs = pl.pallas_call(
        kern,
        out_shape=tuple(out_shape),
        grid=(B, S // tq),                    # b outer so K/V block is not re-DMA'd per q-tile
        in_specs=[
            pl.BlockSpec((1, tq, D), lambda b, s: (b, s, 0)),        # q tile
            pl.BlockSpec((1, S, 2 * D), lambda b, s: (b, 0, 0)),     # K/V resident per batch
            pl.BlockSpec((1, tq, D), lambda b, s: (b, s, 0)),        # residual (x_rot)
            _resident_spec((1, D)),                                  # gamma1
            _resident_spec((1, D)),                                  # beta1
        ],
        out_specs=tuple(out_specs),
        compiler_params=pltpu.CompilerParams(
            dimension_semantics=("parallel", "parallel"),
            vmem_limit_bytes=_vmem_limit_bytes()),
        cost_estimate=pl.CostEstimate(flops=flops, transcendentals=transcendentals,
                                      bytes_accessed=bytes_accessed),
    )(q, kv, x_rot, gamma, beta)
    if return_weights:
        return outs[0], outs[1]
    return outs[0], None


# ----------------------------------------------------------------------------
# Kernel C: fc1 + ModReLU + fc2 + residual + quaternion layer-norm 2 + un-permute
# ----------------------------------------------------------------------------

def _ffn_norm_kernel(x1_ref, w1_ref, b1_ref, mb_ref, w2_ref, b2_ref,
                     g_ref, bt_ref, pt_ref, o_ref, *, eps, mm_dtype, precise):
    Hp = mb_ref.shape[-1]
    D = x1_ref.shape[-1]
    Ep = D // 4
    x1 = x1_ref[...].astype(jnp.float32)

    h = (jnp.dot(x1.astype(mm_dtype), w1_ref[...],
                 preferred_element_type=jnp.float32) + b1_ref[...])
    hs = h * h
    nsq = hs[:, 0:Hp] + hs[:, Hp:2 * Hp] + hs[:, 2 * Hp:3 * Hp] + hs[:, 3 * Hp:4 * Hp]
    norm = jnp.sqrt(nsq)
    num = jnp.maximum(norm + mb_ref[...], 0.0)
    if precise:
        scale = num / (norm + 1e-6)
    else:
        scale = num * pl.reciprocal(norm + 1e-6, approx=True)
    h = h * jnp.tile(scale, (1, 4))

    ff = (jnp.dot(h.astype(mm_dtype), w2_ref[...],
                  preferred_element_type=jnp.float32) + b2_ref[...])
    t = x1 + ff
    sq = t * t
    ssum = (sq[:, 0:Ep] + sq[:, Ep:2 * Ep]
            + sq[:, 2 * Ep:3 * Ep] + sq[:, 3 * Ep:4 * Ep]) + eps
    inv = (1.0 / jnp.sqrt(ssum)) if precise else lax.rsqrt(ssum)
    out_cb = g_ref[...] * (t * jnp.tile(inv, (1, 4))) + bt_ref[...]
    # component-block -> interleaved (e*4+c) so the caller's reshape to (B,S,E,4)
    # is a free bitcast (no XLA transpose HBM round trip); also drops E padding.
    o_ref[...] = jnp.dot(out_cb.astype(mm_dtype), pt_ref[...],
                         preferred_element_type=jnp.float32).astype(o_ref.dtype)


def ffn_norm(x1, w1, b1, mb, w2, b2, gamma, beta, pt, *, eps=1e-6, mm_dtype, precise):
    N, D = x1.shape
    H4 = w1.shape[-1]
    Dout = pt.shape[-1]
    max_tile = 128 if H4 >= 2048 else 256      # bound the (tn,4H) f32 temp for large H
    tn = _tile(N, max_tile)
    kern = functools.partial(_ffn_norm_kernel, eps=eps, mm_dtype=mm_dtype, precise=precise)
    flops = 4 * N * D * H4 + 2 * N * D * Dout + 24 * N * H4
    transcendentals = N * (H4 // 4) + N * (D // 4)
    bytes_accessed = 4 * (N * (D + Dout) + 2 * D * H4 + D * Dout)
    return pl.pallas_call(
        kern,
        out_shape=jax.ShapeDtypeStruct((N, Dout), jnp.float32),
        grid=(N // tn,),
        in_specs=[
            pl.BlockSpec((tn, D), lambda i: (i, 0)),
            _resident_spec((D, H4)),          # fc1 Hamilton block
            _resident_spec((1, H4)),
            _resident_spec((1, H4 // 4)),     # ModReLU bias
            _resident_spec((H4, D)),          # fc2 Hamilton block
            _resident_spec((1, D)),
            _resident_spec((1, D)),           # gamma2
            _resident_spec((1, D)),           # beta2
            _resident_spec((D, Dout)),        # un-permutation
        ],
        out_specs=pl.BlockSpec((tn, Dout), lambda i: (i, 0)),
        compiler_params=pltpu.CompilerParams(
            dimension_semantics=("parallel",),
            vmem_limit_bytes=_vmem_limit_bytes()),
        cost_estimate=pl.CostEstimate(flops=flops, transcendentals=transcendentals,
                                      bytes_accessed=bytes_accessed),
    )(x1, w1, b1, mb, w2, b2, gamma, beta, pt)


# ----------------------------------------------------------------------------
# Parameters (deterministic; random gammas/betas/biases to strengthen validation —
# the PyTorch module's forward semantics are identical for any parameter values)
# ----------------------------------------------------------------------------

def xavier_qweight(key, in_f, out_f):
    limit = math.sqrt(6.0 / (in_f + out_f))
    return jax.random.uniform(key, (4, in_f, out_f), jnp.float32, -limit, limit)


def make_params(key, embedding_dim, hidden_dim, seq_length):
    ks = jax.random.split(key, 15)
    E, H = embedding_dim, hidden_dim
    params = {
        "q_w": xavier_qweight(ks[0], E, E),
        "k_w": xavier_qweight(ks[1], E, E),
        "v_w": xavier_qweight(ks[2], E, E),
        "fc1_w": xavier_qweight(ks[3], E, H),
        "fc2_w": xavier_qweight(ks[4], H, E),
        "q_b": 0.1 * jax.random.normal(ks[5], (4, E), jnp.float32),
        "k_b": 0.1 * jax.random.normal(ks[6], (4, E), jnp.float32),
        "v_b": 0.1 * jax.random.normal(ks[7], (4, E), jnp.float32),
        "fc1_b": 0.1 * jax.random.normal(ks[8], (4, H), jnp.float32),
        "fc2_b": 0.1 * jax.random.normal(ks[9], (4, E), jnp.float32),
        "modrelu_b": 0.1 * jax.random.normal(ks[10], (1, H), jnp.float32),
        "gamma1": 1.0 + 0.1 * jax.random.normal(ks[11], (4, E), jnp.float32),
        "beta1": 0.1 * jax.random.normal(ks[12], (4, E), jnp.float32),
        "gamma2": 1.0 + 0.1 * jax.random.normal(ks[13], (4, E), jnp.float32),
        "beta2": 0.1 * jax.random.normal(ks[14], (4, E), jnp.float32),
    }
    positions = jnp.arange(seq_length, dtype=jnp.float32)[:, None]
    scale = 1.0 / (10000.0 ** (jnp.arange(E, dtype=jnp.float32) / E))
    params["theta"] = positions * (jnp.pi / seq_length) * scale       # (S, E)
    return params


# ----------------------------------------------------------------------------
# Forward pass (weight/layout glue in JAX, all activation compute in Pallas)
# ----------------------------------------------------------------------------

def _pad_last(a, new):
    return jnp.pad(a, [(0, 0)] * (a.ndim - 1) + [(0, new - a.shape[-1])])


def quaternion_transformer_block(x, params, mask=None, *, precise=True,
                                 return_attention_weights=True):
    """x: (B, S, E, 4) float32.  Returns (out (B,S,E,4), attn_weights (B,S,S) or None).

    precise=True  : f32 MXU operands + exact divide/sqrt (validates to 1e-4 vs reference)
    precise=False : bf16 MXU operands, bf16 intermediates, EUP approx reciprocal / rsqrt
    """
    if mask is not None:
        raise NotImplementedError("TODO(synk): attention mask not implemented")
    B, S, E, _ = x.shape
    H = params["fc1_w"].shape[-1]
    Ep = _round_up(E, 32)            # 4*Ep multiple of 128 lanes
    Hp = _round_up(H, 32)            # 4*Hp multiple of 128 lanes
    D = 4 * Ep
    Din = 4 * E
    act_dtype = jnp.float32 if precise else jnp.bfloat16
    mm_dtype = jnp.float32 if precise else jnp.bfloat16

    def pad_qw(w, ip, op):
        return jnp.pad(w, ((0, 0), (0, ip - w.shape[1]), (0, op - w.shape[2])))

    def pad_qvec(v, op):             # (4, n) -> (1, 4*op) component-block row
        return _pad_last(v, op).reshape(1, 4 * op)

    # fused QKV Hamilton block weight (D, 3D) and bias (1, 3D)
    w_qkv = jnp.concatenate([hamilton_block(pad_qw(params["q_w"], Ep, Ep)),
                             hamilton_block(pad_qw(params["k_w"], Ep, Ep)),
                             hamilton_block(pad_qw(params["v_w"], Ep, Ep))], axis=1)
    b_qkv = jnp.concatenate([pad_qvec(params["q_b"], Ep),
                             pad_qvec(params["k_b"], Ep),
                             pad_qvec(params["v_b"], Ep)], axis=1)
    w1 = hamilton_block(pad_qw(params["fc1_w"], Ep, Hp))      # (D, 4Hp)
    w2 = hamilton_block(pad_qw(params["fc2_w"], Hp, Ep))      # (4Hp, D)
    b1 = pad_qvec(params["fc1_b"], Hp)
    b2 = pad_qvec(params["fc2_b"], Ep)
    mb = _pad_last(params["modrelu_b"], Hp)
    gamma1 = pad_qvec(params["gamma1"], Ep)
    beta1 = pad_qvec(params["beta1"], Ep)
    gamma2 = pad_qvec(params["gamma2"], Ep)
    beta2 = pad_qvec(params["beta2"], Ep)

    # interleaved <-> component-block permutations; P also zero-pads E->Ep, Pt un-pads.
    rows = jnp.arange(Din)
    e_idx, c_idx = rows // 4, rows % 4
    cols = c_idx * Ep + e_idx
    P = jnp.zeros((Din, D), jnp.float32).at[rows, cols].set(1.0)
    Pt = jnp.zeros((D, Din), jnp.float32).at[cols, rows].set(1.0)

    # composed rotation r_tot = r_k (x) r_ij  (one in-kernel qmul instead of two)
    ck = jnp.cos(params["theta"])
    sk = jnp.sin(params["theta"])
    ra1, rb1, rc1, rd1 = ck, sk, -sk, ck          # r_k
    ra2, rb2, rc2, rd2 = ck, -sk, sk, ck          # r_ij
    rot = jnp.stack([
        ra1 * ra2 - rb1 * rb2 - rc1 * rc2 - rd1 * rd2,
        ra1 * rb2 + rb1 * ra2 + rc1 * rd2 - rd1 * rc2,
        ra1 * rc2 - rb1 * rd2 + rc1 * ra2 + rd1 * rb2,
        ra1 * rd2 + rb1 * rc2 - rc1 * rb2 + rd1 * ra2,
    ], axis=0)                                    # (4, S, E)
    rot = _pad_last(rot, Ep)

    if not precise:
        w_qkv = w_qkv.astype(jnp.bfloat16)
        w1 = w1.astype(jnp.bfloat16)
        w2 = w2.astype(jnp.bfloat16)
        P = P.astype(jnp.bfloat16)
        Pt = Pt.astype(jnp.bfloat16)

    # (B,S,E,4) -> (B,S,4E) interleaved: free reshape (no transpose copy).
    x_il = x.reshape(B, S, Din)

    # Kernel A
    x_rot, q, kv = rot_qkv(x_il, P, rot, w_qkv, b_qkv,
                           Ep=Ep, act_dtype=act_dtype, mm_dtype=mm_dtype)

    # Kernel B
    x1, attn_w = attn_norm(q, kv, x_rot, gamma1, beta1,
                           embedding_dim=E, act_dtype=act_dtype, mm_dtype=mm_dtype,
                           precise=precise, return_weights=return_attention_weights)

    # Kernel C
    out_flat = ffn_norm(x1.reshape(B * S, D), w1, b1, mb, w2, b2,
                        gamma2, beta2, Pt, mm_dtype=mm_dtype, precise=precise)

    out = out_flat.reshape(B, S, E, 4)            # free reshape (interleaved columns)
    return out, attn_w


# ----------------------------------------------------------------------------
# Pure-JAX reference (mirrors the PyTorch forward exactly)
# ----------------------------------------------------------------------------

def _qmul_ref(q1, q2):
    a1, b1, c1, d1 = q1[..., 0], q1[..., 1], q1[..., 2], q1[..., 3]
    a2, b2, c2, d2 = q2[..., 0], q2[..., 1], q2[..., 2], q2[..., 3]
    r = a1 * a2 - b1 * b2 - c1 * c2 - d1 * d2
    i = a1 * b2 + b1 * a2 + c1 * d2 - d1 * c2
    j = a1 * c2 - b1 * d2 + c1 * a2 + d1 * b2
    k = a1 * d2 + b1 * c2 - c1 * b2 + d1 * a2
    return jnp.stack([r, i, j, k], axis=-1)


def _qlinear_ref(x, w, b):
    r, i, j, k = x[..., 0], x[..., 1], x[..., 2], x[..., 3]
    wr, wi, wj, wk = w[0], w[1], w[2], w[3]
    r_out = r @ wr - i @ wi - j @ wj - k @ wk
    i_out = r @ wi + i @ wr + j @ wk - k @ wj
    j_out = r @ wj - i @ wk + j @ wr + k @ wi
    k_out = r @ wk + i @ wj - j @ wi + k @ wr
    out = jnp.stack([r_out, i_out, j_out, k_out], axis=-1)
    return out + b.T[None, None]


def reference_block(x, params):
    B, S, E, _ = x.shape
    cos = jnp.cos(params["theta"])[..., None]
    sin = jnp.sin(params["theta"])[..., None]
    r_ij = jnp.concatenate([cos, -sin, sin, cos], axis=-1)
    r_k = jnp.concatenate([cos, sin, -sin, cos], axis=-1)
    xr = _qmul_ref(r_k, _qmul_ref(r_ij, x))

    Q = _qlinear_ref(xr, params["q_w"], params["q_b"])
    K = _qlinear_ref(xr, params["k_w"], params["k_b"])
    V = _qlinear_ref(xr, params["v_w"], params["v_b"])
    scores = jnp.einsum("bqfd,bkfd->bqk", Q, K) / math.sqrt(E * 4)
    w = jax.nn.softmax(scores, axis=-1)
    attn = jnp.einsum("bqk,bkfd->bqfd", w, V)

    def qnorm(t, gamma, beta):
        n = jnp.sqrt(jnp.sum(t * t, axis=-1, keepdims=True) + 1e-6)
        return gamma.T[None, None] * (t / n) + beta.T[None, None]

    x1 = qnorm(xr + attn, params["gamma1"], params["beta1"])

    h = _qlinear_ref(x1, params["fc1_w"], params["fc1_b"])
    nrm = jnp.linalg.norm(h, axis=-1)
    scale = jax.nn.relu(nrm + params["modrelu_b"][0][None, None]) / (nrm + 1e-6)
    h = h * scale[..., None]
    ff = _qlinear_ref(h, params["fc2_w"], params["fc2_b"])
    x2 = qnorm(x1 + ff, params["gamma2"], params["beta2"])
    return x2, w


# ----------------------------------------------------------------------------
# Main
# ----------------------------------------------------------------------------

if __name__ == "__main__":
    B, S, E, H = 2, 8, 16, 32

    key = jax.random.PRNGKey(0)
    k_x, k_p = jax.random.split(key)
    x = jax.random.normal(k_x, (B, S, E, 4), jnp.float32)
    params = make_params(k_p, E, H, S)

    _single_buffer_supported()   # run capability probe eagerly (outside jit)

    # precise path: strict f32 check against the reference.
    fwd = jax.jit(functools.partial(quaternion_transformer_block, precise=True))
    out, attn_w = jax.block_until_ready(fwd(x, params))

    ref_out, ref_w = reference_block(x, params)
    assert out.shape == (B, S, E, 4) and attn_w.shape == (B, S, S)
    assert jnp.allclose(out, ref_out, rtol=1e-4, atol=1e-4), \
        float(jnp.max(jnp.abs(out - ref_out)))
    assert jnp.allclose(attn_w, ref_w, rtol=1e-4, atol=1e-4), \
        float(jnp.max(jnp.abs(attn_w - ref_w)))

    # fast path (bf16 MXU operands / intermediates, EUP approx reciprocal): loose smoke check.
    fwd_fast = jax.jit(functools.partial(quaternion_transformer_block, precise=False))
    out_f, attn_f = jax.block_until_ready(fwd_fast(x, params))
    assert float(jnp.max(jnp.abs(out_f - ref_out))) < 0.3
    assert float(jnp.max(jnp.abs(attn_f - ref_w))) < 0.3

    print("KERNEL_OK")
</pallas_src>

<mosaic_0001>
module attributes {stable_mosaic.version = 11 : i64} {
  func.func @probe(%arg0: i32, %arg1: memref<8x128xf32, #tpu.memory_space<vmem>>, %arg2: memref<8x128xf32, #tpu.memory_space<vmem>>) attributes {dimension_semantics = [#tpu.dimension_semantics<arbitrary>], iteration_bounds = array<i64: 1>, scalar_prefetch = 0 : i64, scratch_operands = 0 : i64, tpu.core_type = #tpu.core_type<tc>, window_params = [{pipeline_mode = #tpu.pipeline_mode<synchronous>, transform_indices = @transform_0, window_bounds = array<i64: 8, 128>}, {pipeline_mode = #tpu.pipeline_mode<synchronous>, transform_indices = @transform_1, window_bounds = array<i64: 8, 128>}]} {
    %c0 = arith.constant 0 : index
    %c0_0 = arith.constant 0 : index
    %0 = vector.load %arg1[%c0, %c0_0] : memref<8x128xf32, #tpu.memory_space<vmem>>, vector<8x128xf32>
    %c0_1 = arith.constant 0 : index
    %c0_2 = arith.constant 0 : index
    %1 = vector.load %arg2[%c0_1, %c0_2] : memref<8x128xf32, #tpu.memory_space<vmem>>, vector<8x128xf32>
    tpu.vector_store %arg2[%c0_1, %c0_2], %0 {strides = array<i32>} : memref<8x128xf32, #tpu.memory_space<vmem>>, vector<8x128xf32>,
    return
  }
  func.func @transform_0(%arg0: i32) -> (i32, i32) {
    %c0_i32 = arith.constant 0 : i32
    %c0_i32_0 = arith.constant 0 : i32
    %c0_i32_1 = arith.constant 0 : i32
    return %c0_i32, %c0_i32_0 : i32, i32
  }
  func.func @transform_1(%arg0: i32) -> (i32, i32) {
    %c0_i32 = arith.constant 0 : i32
    %c0_i32_0 = arith.constant 0 : i32
    %c0_i32_1 = arith.constant 0 : i32
    return %c0_i32, %c0_i32_0 : i32, i32
  }
}

module attributes {stable_mosaic.version = 11 : i64} {
  func.func @_rot_qkv_kernel(%arg0: i32, %arg1: i32, %arg2: memref<1x8x64xf32, #tpu.memory_space<vmem>>, %arg3: memref<64x128xf32, #tpu.memory_space<vmem>>, %arg4: memref<4x8x32xf32, #tpu.memory_space<vmem>>, %arg5: memref<128x384xf32, #tpu.memory_space<vmem>>, %arg6: memref<1x384xf32, #tpu.memory_space<vmem>>, %arg7: memref<1x8x128xf32, #tpu.memory_space<vmem>>, %arg8: memref<1x8x128xf32, #tpu.memory_space<vmem>>, %arg9: memref<1x8x256xf32, #tpu.memory_space<vmem>>) attributes {dimension_semantics = [#tpu.dimension_semantics<parallel>, #tpu.dimension_semantics<parallel>], iteration_bounds = array<i64: 1, 2>, scalar_prefetch = 0 : i64, scratch_operands = 0 : i64, tpu.core_type = #tpu.core_type<tc>, window_params = [{transform_indices = @transform_0, window_bounds = array<i64: 1, 8, 64>}, {pipeline_mode = #tpu.pipeline_mode<synchronous>, transform_indices = @transform_1, window_bounds = array<i64: 64, 128>}, {transform_indices = @transform_2, window_bounds = array<i64: 4, 8, 32>}, {pipeline_mode = #tpu.pipeline_mode<synchronous>, transform_indices = @transform_3, window_bounds = array<i64: 128, 384>}, {pipeline_mode = #tpu.pipeline_mode<synchronous>, transform_indices = @transform_4, window_bounds = array<i64: 1, 384>}, {transform_indices = @transform_5, window_bounds = array<i64: 1, 8, 128>}, {transform_indices = @transform_6, window_bounds = array<i64: 1, 8, 128>}, {transform_indices = @transform_7, window_bounds = array<i64: 1, 8, 256>}]} {
    %c0 = arith.constant 0 : index
    %c0_0 = arith.constant 0 : index
    %c0_1 = arith.constant 0 : index
    %0 = vector.load %arg2[%c0, %c0_0, %c0_1] : memref<1x8x64xf32, #tpu.memory_space<vmem>>, vector<1x8x64xf32>
    %1 = vector.shape_cast %0 : vector<1x8x64xf32> to vector<8x64xf32>
    %c0_2 = arith.constant 0 : index
    %c0_3 = arith.constant 0 : index
    %2 = vector.load %arg3[%c0_2, %c0_3] : memref<64x128xf32, #tpu.memory_space<vmem>>, vector<64x128xf32>
    %cst = arith.constant dense<0.000000e+00> : vector<8x128xf32>
    %3 = tpu.matmul %1, %2, %cst {dimension_numbers = #tpu.dot_dimension_numbers<[1], [0], [0], [1], [0, 0, 1, 1], [], []>} : vector<8x64xf32>, vector<64x128xf32>, vector<8x128xf32> -> vector<8x128xf32>
    %c0_4 = arith.constant 0 : index
    %c0_5 = arith.constant 0 : index
    %c0_6 = arith.constant 0 : index
    %4 = vector.load %arg4[%c0_4, %c0_5, %c0_6] : memref<4x8x32xf32, #tpu.memory_space<vmem>>, vector<1x8x32xf32>
    %5 = vector.shape_cast %4 : vector<1x8x32xf32> to vector<8x32xf32>
    %c1 = arith.constant 1 : index
    %c0_7 = arith.constant 0 : index
    %c0_8 = arith.constant 0 : index
    %6 = vector.load %arg4[%c1, %c0_7, %c0_8] : memref<4x8x32xf32, #tpu.memory_space<vmem>>, vector<1x8x32xf32>
    %7 = vector.shape_cast %6 : vector<1x8x32xf32> to vector<8x32xf32>
    %c2 = arith.constant 2 : index
    %c0_9 = arith.constant 0 : index
    %c0_10 = arith.constant 0 : index
    %8 = vector.load %arg4[%c2, %c0_9, %c0_10] : memref<4x8x32xf32, #tpu.memory_space<vmem>>, vector<1x8x32xf32>
    %9 = vector.shape_cast %8 : vector<1x8x32xf32> to vector<8x32xf32>
    %c3 = arith.constant 3 : index
    %c0_11 = arith.constant 0 : index
    %c0_12 = arith.constant 0 : index
    %10 = vector.load %arg4[%c3, %c0_11, %c0_12] : memref<4x8x32xf32, #tpu.memory_space<vmem>>, vector<1x8x32xf32>
    %11 = vector.shape_cast %10 : vector<1x8x32xf32> to vector<8x32xf32>
    %12 = vector.extract_strided_slice %3 {offsets = [0, 0], sizes = [8, 32], strides = [1, 1]} : vector<8x128xf32> to vector<8x32xf32>
    %13 = vector.extract_strided_slice %3 {offsets = [0, 32], sizes = [8, 32], strides = [1, 1]} : vector<8x128xf32> to vector<8x32xf32>
    %14 = vector.extract_strided_slice %3 {offsets = [0, 64], sizes = [8, 32], strides = [1, 1]} : vector<8x128xf32> to vector<8x32xf32>
    %15 = vector.extract_strided_slice %3 {offsets = [0, 96], sizes = [8, 32], strides = [1, 1]} : vector<8x128xf32> to vector<8x32xf32>
    %16 = arith.mulf %5, %12 : vector<8x32xf32>
    %17 = arith.mulf %7, %13 : vector<8x32xf32>
    %18 = arith.subf %16, %17 : vector<8x32xf32>
    %19 = arith.mulf %9, %14 : vector<8x32xf32>
    %20 = arith.subf %18, %19 : vector<8x32xf32>
    %21 = arith.mulf %11, %15 : vector<8x32xf32>
    %22 = arith.subf %20, %21 : vector<8x32xf32>
    %23 = arith.mulf %7, %12 : vector<8x32xf32>
    %24 = arith.mulf %5, %13 : vector<8x32xf32>
    %25 = arith.addf %23, %24 : vector<8x32xf32>
    %26 = arith.mulf %11, %14 : vector<8x32xf32>
    %27 = arith.subf %25, %26 : vector<8x32xf32>
    %28 = arith.mulf %9, %15 : vector<8x32xf32>
    %29 = arith.addf %27, %28 : vector<8x32xf32>
    %30 = arith.mulf %9, %12 : vector<8x32xf32>
    %31 = arith.mulf %11, %13 : vector<8x32xf32>
    %32 = arith.addf %30, %31 : vector<8x32xf32>
    %33 = arith.mulf %5, %14 : vector<8x32xf32>
    %34 = arith.addf %32, %33 : vector<8x32xf32>
    %35 = arith.mulf %7, %15 : vector<8x32xf32>
    %36 = arith.subf %34, %35 : vector<8x32xf32>
    %37 = arith.mulf %11, %12 : vector<8x32xf32>
    %38 = arith.mulf %9, %13 : vector<8x32xf32>
    %39 = arith.subf %37, %38 : vector<8x32xf32>
    %40 = arith.mulf %7, %14 : vector<8x32xf32>
    %41 = arith.addf %39, %40 : vector<8x32xf32>
    %42 = arith.mulf %5, %15 : vector<8x32xf32>
    %43 = arith.addf %41, %42 : vector<8x32xf32>
    %44 = tpu.concatenate %22, %29, %36, %43 in 1 : vector<8x32xf32>, vector<8x32xf32>, vector<8x32xf32>, vector<8x32xf32> -> vector<8x128xf32>
    %c0_13 = arith.constant 0 : index
    %c0_14 = arith.constant 0 : index
    %c0_15 = arith.constant 0 : index
    %45 = vector.load %arg7[%c0_13, %c0_14, %c0_15] : memref<1x8x128xf32, #tpu.memory_space<vmem>>, vector<1x8x128xf32>
    %46 = vector.shape_cast %45 : vector<1x8x128xf32> to vector<8x128xf32>
    %47 = vector.shape_cast %44 : vector<8x128xf32> to vector<1x8x128xf32>
    tpu.vector_store %arg7[%c0_13, %c0_14, %c0_15], %47 {strides = array<i32>} : memref<1x8x128xf32, #tpu.memory_space<vmem>>, vector<1x8x128xf32>,
    %c0_16 = arith.constant 0 : index
    %c0_17 = arith.constant 0 : index
    %48 = vector.load %arg5[%c0_16, %c0_17] : memref<128x384xf32, #tpu.memory_space<vmem>>, vector<128x384xf32>
    %cst_18 = arith.constant dense<0.000000e+00> : vector<8x384xf32>
    %49 = tpu.matmul %44, %48, %cst_18 {dimension_numbers = #tpu.dot_dimension_numbers<[1], [0], [0], [1], [0, 0, 1, 1], [], []>} : vector<8x128xf32>, vector<128x384xf32>, vector<8x384xf32> -> vector<8x384xf32>
    %c0_19 = arith.constant 0 : index
    %c0_20 = arith.constant 0 : index
    %50 = vector.load %arg6[%c0_19, %c0_20] : memref<1x384xf32, #tpu.memory_space<vmem>>, vector<1x384xf32>
    %51 = vector.broadcast %50 : vector<1x384xf32> to vector<8x384xf32>
    %52 = arith.addf %49, %51 : vector<8x384xf32>
    %53 = vector.extract_strided_slice %52 {offsets = [0, 0], sizes = [8, 128], strides = [1, 1]} : vector<8x384xf32> to vector<8x128xf32>
    %c0_21 = arith.constant 0 : index
    %c0_22 = arith.constant 0 : index
    %c0_23 = arith.constant 0 : index
    %54 = vector.load %arg8[%c0_21, %c0_22, %c0_23] : memref<1x8x128xf32, #tpu.memory_space<vmem>>, vector<1x8x128xf32>
    %55 = vector.shape_cast %54 : vector<1x8x128xf32> to vector<8x128xf32>
    %56 = vector.shape_cast %53 : vector<8x128xf32> to vector<1x8x128xf32>
    tpu.vector_store %arg8[%c0_21, %c0_22, %c0_23], %56 {strides = array<i32>} : memref<1x8x128xf32, #tpu.memory_space<vmem>>, vector<1x8x128xf32>,
    %57 = vector.extract_strided_slice %52 {offsets = [0, 128], sizes = [8, 256], strides = [1, 1]} : vector<8x384xf32> to vector<8x256xf32>
    %c0_24 = arith.constant 0 : index
    %c0_25 = arith.constant 0 : index
    %c0_26 = arith.constant 0 : index
    %58 = vector.load %arg9[%c0_24, %c0_25, %c0_26] : memref<1x8x256xf32, #tpu.memory_space<vmem>>, vector<1x8x256xf32>
    %59 = vector.shape_cast %58 : vector<1x8x256xf32> to vector<8x256xf32>
    %60 = vector.shape_cast %57 : vector<8x256xf32> to vector<1x8x256xf32>
    tpu.vector_store %arg9[%c0_24, %c0_25, %c0_26], %60 {strides = array<i32>} : memref<1x8x256xf32, #tpu.memory_space<vmem>>, vector<1x8x256xf32>,
    return
  }
  func.func @transform_0(%arg0: i32, %arg1: i32) -> (i32, i32, i32) {
    %c0_i32 = arith.constant 0 : i32
    %c0_i32_0 = arith.constant 0 : i32
    return %arg1, %arg0, %c0_i32 : i32, i32, i32
  }
  func.func @transform_1(%arg0: i32, %arg1: i32) -> (i32, i32) {
    %c0_i32 = arith.constant 0 : i32
    %c0_i32_0 = arith.constant 0 : i32
    %c0_i32_1 = arith.constant 0 : i32
    return %c0_i32, %c0_i32_0 : i32, i32
  }
  func.func @transform_2(%arg0: i32, %arg1: i32) -> (i32, i32, i32) {
    %c0_i32 = arith.constant 0 : i32
    %c0_i32_0 = arith.constant 0 : i32
    %c0_i32_1 = arith.constant 0 : i32
    return %c0_i32, %arg0, %c0_i32_0 : i32, i32, i32
  }
  func.func @transform_3(%arg0: i32, %arg1: i32) -> (i32, i32) {
    %c0_i32 = arith.constant 0 : i32
    %c0_i32_0 = arith.constant 0 : i32
    %c0_i32_1 = arith.constant 0 : i32
    return %c0_i32, %c0_i32_0 : i32, i32
  }
  func.func @transform_4(%arg0: i32, %arg1: i32) -> (i32, i32) {
    %c0_i32 = arith.constant 0 : i32
    %c0_i32_0 = arith.constant 0 : i32
    %c0_i32_1 = arith.constant 0 : i32
    return %c0_i32, %c0_i32_0 : i32, i32
  }
  func.func @transform_5(%arg0: i32, %arg1: i32) -> (i32, i32, i32) {
    %c0_i32 = arith.constant 0 : i32
    %c0_i32_0 = arith.constant 0 : i32
    return %arg1, %arg0, %c0_i32 : i32, i32, i32
  }
  func.func @transform_6(%arg0: i32, %arg1: i32) -> (i32, i32, i32) {
    %c0_i32 = arith.constant 0 : i32
    %c0_i32_0 = arith.constant 0 : i32
    return %arg1, %arg0, %c0_i32 : i32, i32, i32
  }
  func.func @transform_7(%arg0: i32, %arg1: i32) -> (i32, i32, i32) {
    %c0_i32 = arith.constant 0 : i32
    %c0_i32_0 = arith.constant 0 : i32
    return %arg1, %arg0, %c0_i32 : i32, i32, i32
  }
}

module attributes {stable_mosaic.version = 11 : i64} {
  func.func @_attn_norm_kernel(%arg0: i32, %arg1: i32, %arg2: memref<1x8x128xf32, #tpu.memory_space<vmem>>, %arg3: memref<1x8x256xf32, #tpu.memory_space<vmem>>, %arg4: memref<1x8x128xf32, #tpu.memory_space<vmem>>, %arg5: memref<1x128xf32, #tpu.memory_space<vmem>>, %arg6: memref<1x128xf32, #tpu.memory_space<vmem>>, %arg7: memref<1x8x128xf32, #tpu.memory_space<vmem>>, %arg8: memref<1x8x8xf32, #tpu.memory_space<vmem>>) attributes {dimension_semantics = [#tpu.dimension_semantics<parallel>, #tpu.dimension_semantics<parallel>], iteration_bounds = array<i64: 2, 1>, scalar_prefetch = 0 : i64, scratch_operands = 0 : i64, tpu.core_type = #tpu.core_type<tc>, window_params = [{transform_indices = @transform_0, window_bounds = array<i64: 1, 8, 128>}, {transform_indices = @transform_1, window_bounds = array<i64: 1, 8, 256>}, {transform_indices = @transform_2, window_bounds = array<i64: 1, 8, 128>}, {pipeline_mode = #tpu.pipeline_mode<synchronous>, transform_indices = @transform_3, window_bounds = array<i64: 1, 128>}, {pipeline_mode = #tpu.pipeline_mode<synchronous>, transform_indices = @transform_4, window_bounds = array<i64: 1, 128>}, {transform_indices = @transform_5, window_bounds = array<i64: 1, 8, 128>}, {transform_indices = @transform_6, window_bounds = array<i64: 1, 8, 8>}]} {
    %c0 = arith.constant 0 : index
    %c0_0 = arith.constant 0 : index
    %c0_1 = arith.constant 0 : index
    %0 = vector.load %arg2[%c0, %c0_0, %c0_1] : memref<1x8x128xf32, #tpu.memory_space<vmem>>, vector<1x8x128xf32>
    %1 = vector.shape_cast %0 : vector<1x8x128xf32> to vector<8x128xf32>
    %c0_2 = arith.constant 0 : index
    %c0_3 = arith.constant 0 : index
    %c0_4 = arith.constant 0 : index
    %2 = vector.load %arg3[%c0_2, %c0_3, %c0_4] : memref<1x8x256xf32, #tpu.memory_space<vmem>>, vector<1x8x256xf32>
    %3 = vector.shape_cast %2 : vector<1x8x256xf32> to vector<8x256xf32>
    %4 = vector.extract_strided_slice %3 {offsets = [0, 0], sizes = [8, 128], strides = [1, 1]} : vector<8x256xf32> to vector<8x128xf32>
    %5 = vector.extract_strided_slice %3 {offsets = [0, 128], sizes = [8, 128], strides = [1, 1]} : vector<8x256xf32> to vector<8x128xf32>
    %cst = arith.constant dense<0.000000e+00> : vector<8x8xf32>
    %6 = tpu.matmul %1, %4, %cst {dimension_numbers = #tpu.dot_dimension_numbers<[1], [1], [0], [0], [0, 0, 1, 0], [], []>} : vector<8x128xf32>, vector<8x128xf32>, vector<8x8xf32> -> vector<8x8xf32>
    %cst_5 = arith.constant 1.250000e-01 : f32
    %7 = vector.broadcast %cst_5 : f32 to vector<8x8xf32>
    %8 = arith.mulf %6, %7 : vector<8x8xf32>
    %cst_6 = arith.constant dense<0xFF800000> : vector<8xf32>
    %9 = vector.multi_reduction <maximumf>, %8, %cst_6 [1] : vector<8x8xf32> to vector<8xf32>
    %10 = vector.shape_cast %9 : vector<8xf32> to vector<8x1xf32>
    %11 = vector.broadcast %10 : vector<8x1xf32> to vector<8x8xf32>
    %12 = arith.subf %8, %11 : vector<8x8xf32>
    %13 = math.exp %12 : vector<8x8xf32>
    %cst_7 = arith.constant dense<0.000000e+00> : vector<8xf32>
    %14 = vector.multi_reduction <add>, %13, %cst_7 [1] : vector<8x8xf32> to vector<8xf32>
    %15 = vector.shape_cast %14 : vector<8xf32> to vector<8x1xf32>
    %16 = tpu.reciprocal %15 : vector<8x1xf32> -> vector<8x1xf32>
    %17 = vector.broadcast %16 : vector<8x1xf32> to vector<8x8xf32>
    %18 = arith.mulf %13, %17 : vector<8x8xf32>
    %c0_8 = arith.constant 0 : index
    %c0_9 = arith.constant 0 : index
    %c0_10 = arith.constant 0 : index
    %19 = vector.load %arg8[%c0_8, %c0_9, %c0_10] : memref<1x8x8xf32, #tpu.memory_space<vmem>>, vector<1x8x8xf32>
    %20 = vector.shape_cast %19 : vector<1x8x8xf32> to vector<8x8xf32>
    %21 = vector.shape_cast %18 : vector<8x8xf32> to vector<1x8x8xf32>
    tpu.vector_store %arg8[%c0_8, %c0_9, %c0_10], %21 {strides = array<i32>} : memref<1x8x8xf32, #tpu.memory_space<vmem>>, vector<1x8x8xf32>,
    %cst_11 = arith.constant dense<0.000000e+00> : vector<8x128xf32>
    %22 = tpu.matmul %18, %5, %cst_11 {dimension_numbers = #tpu.dot_dimension_numbers<[1], [0], [0], [1], [0, 0, 1, 1], [], []>} : vector<8x8xf32>, vector<8x128xf32>, vector<8x128xf32> -> vector<8x128xf32>
    %c0_12 = arith.constant 0 : index
    %c0_13 = arith.constant 0 : index
    %c0_14 = arith.constant 0 : index
    %23 = vector.load %arg4[%c0_12, %c0_13, %c0_14] : memref<1x8x128xf32, #tpu.memory_space<vmem>>, vector<1x8x128xf32>
    %24 = vector.shape_cast %23 : vector<1x8x128xf32> to vector<8x128xf32>
    %25 = arith.addf %24, %22 : vector<8x128xf32>
    %26 = arith.mulf %25, %25 : vector<8x128xf32>
    %27 = vector.extract_strided_slice %26 {offsets = [0, 0], sizes = [8, 32], strides = [1, 1]} : vector<8x128xf32> to vector<8x32xf32>
    %28 = vector.extract_strided_slice %26 {offsets = [0, 32], sizes = [8, 32], strides = [1, 1]} : vector<8x128xf32> to vector<8x32xf32>
    %29 = arith.addf %27, %28 : vector<8x32xf32>
    %30 = vector.extract_strided_slice %26 {offsets = [0, 64], sizes = [8, 32], strides = [1, 1]} : vector<8x128xf32> to vector<8x32xf32>
    %31 = arith.addf %29, %30 : vector<8x32xf32>
    %32 = vector.extract_strided_slice %26 {offsets = [0, 96], sizes = [8, 32], strides = [1, 1]} : vector<8x128xf32> to vector<8x32xf32>
    %33 = arith.addf %31, %32 : vector<8x32xf32>
    %cst_15 = arith.constant 9.99999997E-7 : f32
    %34 = vector.broadcast %cst_15 : f32 to vector<8x32xf32>
    %35 = arith.addf %33, %34 : vector<8x32xf32>
    %36 = math.sqrt %35 : vector<8x32xf32>
    %cst_16 = arith.constant 1.000000e+00 : f32
    %37 = vector.broadcast %cst_16 : f32 to vector<8x32xf32>
    %38 = arith.divf %37, %36 : vector<8x32xf32>
    %c0_17 = arith.constant 0 : index
    %c0_18 = arith.constant 0 : index
    %39 = vector.load %arg5[%c0_17, %c0_18] : memref<1x128xf32, #tpu.memory_space<vmem>>, vector<1x128xf32>
    %40 = tpu.concatenate %38, %38, %38, %38 in 1 : vector<8x32xf32>, vector<8x32xf32>, vector<8x32xf32>, vector<8x32xf32> -> vector<8x128xf32>
    %41 = arith.mulf %25, %40 : vector<8x128xf32>
    %42 = vector.broadcast %39 : vector<1x128xf32> to vector<8x128xf32>
    %43 = arith.mulf %42, %41 : vector<8x128xf32>
    %c0_19 = arith.constant 0 : index
    %c0_20 = arith.constant 0 : index
    %44 = vector.load %arg6[%c0_19, %c0_20] : memref<1x128xf32, #tpu.memory_space<vmem>>, vector<1x128xf32>
    %45 = vector.broadcast %44 : vector<1x128xf32> to vector<8x128xf32>
    %46 = arith.addf %43, %45 : vector<8x128xf32>
    %c0_21 = arith.constant 0 : index
    %c0_22 = arith.constant 0 : index
    %c0_23 = arith.constant 0 : index
    %47 = vector.load %arg7[%c0_21, %c0_22, %c0_23] : memref<1x8x128xf32, #tpu.memory_space<vmem>>, vector<1x8x128xf32>
    %48 = vector.shape_cast %47 : vector<1x8x128xf32> to vector<8x128xf32>
    %49 = vector.shape_cast %46 : vector<8x128xf32> to vector<1x8x128xf32>
    tpu.vector_store %arg7[%c0_21, %c0_22, %c0_23], %49 {strides = array<i32>} : memref<1x8x128xf32, #tpu.memory_space<vmem>>, vector<1x8x128xf32>,
    return
  }
  func.func @transform_0(%arg0: i32, %arg1: i32) -> (i32, i32, i32) {
    %c0_i32 = arith.constant 0 : i32
    %c0_i32_0 = arith.constant 0 : i32
    return %arg0, %arg1, %c0_i32 : i32, i32, i32
  }
  func.func @transform_1(%arg0: i32, %arg1: i32) -> (i32, i32, i32) {
    %c0_i32 = arith.constant 0 : i32
    %c0_i32_0 = arith.constant 0 : i32
    %c0_i32_1 = arith.constant 0 : i32
    return %arg0, %c0_i32, %c0_i32_0 : i32, i32, i32
  }
  func.func @transform_2(%arg0: i32, %arg1: i32) -> (i32, i32, i32) {
    %c0_i32 = arith.constant 0 : i32
    %c0_i32_0 = arith.constant 0 : i32
    return %arg0, %arg1, %c0_i32 : i32, i32, i32
  }
  func.func @transform_3(%arg0: i32, %arg1: i32) -> (i32, i32) {
    %c0_i32 = arith.constant 0 : i32
    %c0_i32_0 = arith.constant 0 : i32
    %c0_i32_1 = arith.constant 0 : i32
    return %c0_i32, %c0_i32_0 : i32, i32
  }
  func.func @transform_4(%arg0: i32, %arg1: i32) -> (i32, i32) {
    %c0_i32 = arith.constant 0 : i32
    %c0_i32_0 = arith.constant 0 : i32
    %c0_i32_1 = arith.constant 0 : i32
    return %c0_i32, %c0_i32_0 : i32, i32
  }
  func.func @transform_5(%arg0: i32, %arg1: i32) -> (i32, i32, i32) {
    %c0_i32 = arith.constant 0 : i32
    %c0_i32_0 = arith.constant 0 : i32
    return %arg0, %arg1, %c0_i32 : i32, i32, i32
  }
  func.func @transform_6(%arg0: i32, %arg1: i32) -> (i32, i32, i32) {
    %c0_i32 = arith.constant 0 : i32
    %c0_i32_0 = arith.constant 0 : i32
    return %arg0, %arg1, %c0_i32 : i32, i32, i32
  }
}

module attributes {stable_mosaic.version = 11 : i64} {
  func.func @_ffn_norm_kernel(%arg0: i32, %arg1: memref<16x128xf32, #tpu.memory_space<vmem>>, %arg2: memref<128x128xf32, #tpu.memory_space<vmem>>, %arg3: memref<1x128xf32, #tpu.memory_space<vmem>>, %arg4: memref<1x32xf32, #tpu.memory_space<vmem>>, %arg5: memref<128x128xf32, #tpu.memory_space<vmem>>, %arg6: memref<1x128xf32, #tpu.memory_space<vmem>>, %arg7: memref<1x128xf32, #tpu.memory_space<vmem>>, %arg8: memref<1x128xf32, #tpu.memory_space<vmem>>, %arg9: memref<128x64xf32, #tpu.memory_space<vmem>>, %arg10: memref<16x64xf32, #tpu.memory_space<vmem>>) attributes {dimension_semantics = [#tpu.dimension_semantics<parallel>], iteration_bounds = array<i64: 1>, scalar_prefetch = 0 : i64, scratch_operands = 0 : i64, tpu.core_type = #tpu.core_type<tc>, window_params = [{transform_indices = @transform_0, window_bounds = array<i64: 16, 128>}, {pipeline_mode = #tpu.pipeline_mode<synchronous>, transform_indices = @transform_1, window_bounds = array<i64: 128, 128>}, {pipeline_mode = #tpu.pipeline_mode<synchronous>, transform_indices = @transform_2, window_bounds = array<i64: 1, 128>}, {pipeline_mode = #tpu.pipeline_mode<synchronous>, transform_indices = @transform_3, window_bounds = array<i64: 1, 32>}, {pipeline_mode = #tpu.pipeline_mode<synchronous>, transform_indices = @transform_4, window_bounds = array<i64: 128, 128>}, {pipeline_mode = #tpu.pipeline_mode<synchronous>, transform_indices = @transform_5, window_bounds = array<i64: 1, 128>}, {pipeline_mode = #tpu.pipeline_mode<synchronous>, transform_indices = @transform_6, window_bounds = array<i64: 1, 128>}, {pipeline_mode = #tpu.pipeline_mode<synchronous>, transform_indices = @transform_7, window_bounds = array<i64: 1, 128>}, {pipeline_mode = #tpu.pipeline_mode<synchronous>, transform_indices = @transform_8, window_bounds = array<i64: 128, 64>}, {transform_indices = @transform_9, window_bounds = array<i64: 16, 64>}]} {
    %c0 = arith.constant 0 : index
    %c0_0 = arith.constant 0 : index
    %0 = vector.load %arg1[%c0, %c0_0] : memref<16x128xf32, #tpu.memory_space<vmem>>, vector<16x128xf32>
    %c0_1 = arith.constant 0 : index
    %c0_2 = arith.constant 0 : index
    %1 = vector.load %arg2[%c0_1, %c0_2] : memref<128x128xf32, #tpu.memory_space<vmem>>, vector<128x128xf32>
    %cst = arith.constant dense<0.000000e+00> : vector<16x128xf32>
    %2 = tpu.matmul %0, %1, %cst {dimension_numbers = #tpu.dot_dimension_numbers<[1], [0], [0], [1], [0, 0, 1, 1], [], []>} : vector<16x128xf32>, vector<128x128xf32>, vector<16x128xf32> -> vector<16x128xf32>
    %c0_3 = arith.constant 0 : index
    %c0_4 = arith.constant 0 : index
    %3 = vector.load %arg3[%c0_3, %c0_4] : memref<1x128xf32, #tpu.memory_space<vmem>>, vector<1x128xf32>
    %4 = vector.broadcast %3 : vector<1x128xf32> to vector<16x128xf32>
    %5 = arith.addf %2, %4 : vector<16x128xf32>
    %6 = arith.mulf %5, %5 : vector<16x128xf32>
    %7 = vector.extract_strided_slice %6 {offsets = [0, 0], sizes = [16, 32], strides = [1, 1]} : vector<16x128xf32> to vector<16x32xf32>
    %8 = vector.extract_strided_slice %6 {offsets = [0, 32], sizes = [16, 32], strides = [1, 1]} : vector<16x128xf32> to vector<16x32xf32>
    %9 = arith.addf %7, %8 : vector<16x32xf32>
    %10 = vector.extract_strided_slice %6 {offsets = [0, 64], sizes = [16, 32], strides = [1, 1]} : vector<16x128xf32> to vector<16x32xf32>
    %11 = arith.addf %9, %10 : vector<16x32xf32>
    %12 = vector.extract_strided_slice %6 {offsets = [0, 96], sizes = [16, 32], strides = [1, 1]} : vector<16x128xf32> to vector<16x32xf32>
    %13 = arith.addf %11, %12 : vector<16x32xf32>
    %14 = math.sqrt %13 : vector<16x32xf32>
    %c0_5 = arith.constant 0 : index
    %c0_6 = arith.constant 0 : index
    %15 = vector.load %arg4[%c0_5, %c0_6] : memref<1x32xf32, #tpu.memory_space<vmem>>, vector<1x32xf32>
    %16 = vector.broadcast %15 : vector<1x32xf32> to vector<16x32xf32>
    %17 = arith.addf %14, %16 : vector<16x32xf32>
    %cst_7 = arith.constant 0.000000e+00 : f32
    %18 = vector.broadcast %cst_7 : f32 to vector<16x32xf32>
    %19 = arith.maximumf %17, %18 : vector<16x32xf32>
    %cst_8 = arith.constant 9.99999997E-7 : f32
    %20 = vector.broadcast %cst_8 : f32 to vector<16x32xf32>
    %21 = arith.addf %14, %20 : vector<16x32xf32>
    %22 = arith.divf %19, %21 : vector<16x32xf32>
    %23 = tpu.concatenate %22, %22, %22, %22 in 1 : vector<16x32xf32>, vector<16x32xf32>, vector<16x32xf32>, vector<16x32xf32> -> vector<16x128xf32>
    %24 = arith.mulf %5, %23 : vector<16x128xf32>
    %c0_9 = arith.constant 0 : index
    %c0_10 = arith.constant 0 : index
    %25 = vector.load %arg5[%c0_9, %c0_10] : memref<128x128xf32, #tpu.memory_space<vmem>>, vector<128x128xf32>
    %cst_11 = arith.constant dense<0.000000e+00> : vector<16x128xf32>
    %26 = tpu.matmul %24, %25, %cst_11 {dimension_numbers = #tpu.dot_dimension_numbers<[1], [0], [0], [1], [0, 0, 1, 1], [], []>} : vector<16x128xf32>, vector<128x128xf32>, vector<16x128xf32> -> vector<16x128xf32>
    %c0_12 = arith.constant 0 : index
    %c0_13 = arith.constant 0 : index
    %27 = vector.load %arg6[%c0_12, %c0_13] : memref<1x128xf32, #tpu.memory_space<vmem>>, vector<1x128xf32>
    %28 = vector.broadcast %27 : vector<1x128xf32> to vector<16x128xf32>
    %29 = arith.addf %26, %28 : vector<16x128xf32>
    %30 = arith.addf %0, %29 : vector<16x128xf32>
    %31 = arith.mulf %30, %30 : vector<16x128xf32>
    %32 = vector.extract_strided_slice %31 {offsets = [0, 0], sizes = [16, 32], strides = [1, 1]} : vector<16x128xf32> to vector<16x32xf32>
    %33 = vector.extract_strided_slice %31 {offsets = [0, 32], sizes = [16, 32], strides = [1, 1]} : vector<16x128xf32> to vector<16x32xf32>
    %34 = arith.addf %32, %33 : vector<16x32xf32>
    %35 = vector.extract_strided_slice %31 {offsets = [0, 64], sizes = [16, 32], strides = [1, 1]} : vector<16x128xf32> to vector<16x32xf32>
    %36 = arith.addf %34, %35 : vector<16x32xf32>
    %37 = vector.extract_strided_slice %31 {offsets = [0, 96], sizes = [16, 32], strides = [1, 1]} : vector<16x128xf32> to vector<16x32xf32>
    %38 = arith.addf %36, %37 : vector<16x32xf32>
    %cst_14 = arith.constant 9.99999997E-7 : f32
    %39 = vector.broadcast %cst_14 : f32 to vector<16x32xf32>
    %40 = arith.addf %38, %39 : vector<16x32xf32>
    %41 = math.sqrt %40 : vector<16x32xf32>
    %cst_15 = arith.constant 1.000000e+00 : f32
    %42 = vector.broadcast %cst_15 : f32 to vector<16x32xf32>
    %43 = arith.divf %42, %41 : vector<16x32xf32>
    %c0_16 = arith.constant 0 : index
    %c0_17 = arith.constant 0 : index
    %44 = vector.load %arg7[%c0_16, %c0_17] : memref<1x128xf32, #tpu.memory_space<vmem>>, vector<1x128xf32>
    %45 = tpu.concatenate %43, %43, %43, %43 in 1 : vector<16x32xf32>, vector<16x32xf32>, vector<16x32xf32>, vector<16x32xf32> -> vector<16x128xf32>
    %46 = arith.mulf %30, %45 : vector<16x128xf32>
    %47 = vector.broadcast %44 : vector<1x128xf32> to vector<16x128xf32>
    %48 = arith.mulf %47, %46 : vector<16x128xf32>
    %c0_18 = arith.constant 0 : index
    %c0_19 = arith.constant 0 : index
    %49 = vector.load %arg8[%c0_18, %c0_19] : memref<1x128xf32, #tpu.memory_space<vmem>>, vector<1x128xf32>
    %50 = vector.broadcast %49 : vector<1x128xf32> to vector<16x128xf32>
    %51 = arith.addf %48, %50 : vector<16x128xf32>
    %c0_20 = arith.constant 0 : index
    %c0_21 = arith.constant 0 : index
    %52 = vector.load %arg9[%c0_20, %c0_21] : memref<128x64xf32, #tpu.memory_space<vmem>>, vector<128x64xf32>
    %cst_22 = arith.constant dense<0.000000e+00> : vector<16x64xf32>
    %53 = tpu.matmul %51, %52, %cst_22 {dimension_numbers = #tpu.dot_dimension_numbers<[1], [0], [0], [1], [0, 0, 1, 1], [], []>} : vector<16x128xf32>, vector<128x64xf32>, vector<16x64xf32> -> vector<16x64xf32>
    %c0_23 = arith.constant 0 : index
    %c0_24 = arith.constant 0 : index
    %54 = vector.load %arg10[%c0_23, %c0_24] : memref<16x64xf32, #tpu.memory_space<vmem>>, vector<16x64xf32>
    tpu.vector_store %arg10[%c0_23, %c0_24], %53 {strides = array<i32>} : memref<16x64xf32, #tpu.memory_space<vmem>>, vector<16x64xf32>,
    return
  }
  func.func @transform_0(%arg0: i32) -> (i32, i32) {
    %c0_i32 = arith.constant 0 : i32
    %c0_i32_0 = arith.constant 0 : i32
    return %arg0, %c0_i32 : i32, i32
  }
  func.func @transform_1(%arg0: i32) -> (i32, i32) {
    %c0_i32 = arith.constant 0 : i32
    %c0_i32_0 = arith.constant 0 : i32
    %c0_i32_1 = arith.constant 0 : i32
    return %c0_i32, %c0_i32_0 : i32, i32
  }
  func.func @transform_2(%arg0: i32) -> (i32, i32) {
    %c0_i32 = arith.constant 0 : i32
    %c0_i32_0 = arith.constant 0 : i32
    %c0_i32_1 = arith.constant 0 : i32
    return %c0_i32, %c0_i32_0 : i32, i32
  }
  func.func @transform_3(%arg0: i32) -> (i32, i32) {
    %c0_i32 = arith.constant 0 : i32
    %c0_i32_0 = arith.constant 0 : i32
    %c0_i32_1 = arith.constant 0 : i32
    return %c0_i32, %c0_i32_0 : i32, i32
  }
  func.func @transform_4(%arg0: i32) -> (i32, i32) {
    %c0_i32 = arith.constant 0 : i32
    %c0_i32_0 = arith.constant 0 : i32
    %c0_i32_1 = arith.constant 0 : i32
    return %c0_i32, %c0_i32_0 : i32, i32
  }
  func.func @transform_5(%arg0: i32) -> (i32, i32) {
    %c0_i32 = arith.constant 0 : i32
    %c0_i32_0 = arith.constant 0 : i32
    %c0_i32_1 = arith.constant 0 : i32
    return %c0_i32, %c0_i32_0 : i32, i32
  }
  func.func @transform_6(%arg0: i32) -> (i32, i32) {
    %c0_i32 = arith.constant 0 : i32
    %c0_i32_0 = arith.constant 0 : i32
    %c0_i32_1 = arith.constant 0 : i32
    return %c0_i32, %c0_i32_0 : i32, i32
  }
  func.func @transform_7(%arg0: i32) -> (i32, i32) {
    %c0_i32 = arith.constant 0 : i32
    %c0_i32_0 = arith.constant 0 : i32
    %c0_i32_1 = arith.constant 0 : i32
    return %c0_i32, %c0_i32_0 : i32, i32
  }
  func.func @transform_8(%arg0: i32) -> (i32, i32) {
    %c0_i32 = arith.constant 0 : i32
    %c0_i32_0 = arith.constant 0 : i32
    %c0_i32_1 = arith.constant 0 : i32
    return %c0_i32, %c0_i32_0 : i32, i32
  }
  func.func @transform_9(%arg0: i32) -> (i32, i32) {
    %c0_i32 = arith.constant 0 : i32
    %c0_i32_0 = arith.constant 0 : i32
    return %arg0, %c0_i32 : i32, i32
  }
}

</mosaic_0001>

<llo_original>
// kernel: tpu_custom_call.1
$region0: #{tpu_custom_call.1}
  #allocation0 [shape = 'u32[]', space=smem, size = 0x4, offset = 0x4, fixed_abs, tag = 'smem constant byte address 0x4 - core index']
  #allocation1 [shape = 'u32[144,128]{1,0:T(1,128)}', space=vmem, size = 0x12000, scoped, tag = 'internal scratch']
  %s0 = inlined_call_operand.hbm [shape: f32[8,128], index: 0, kind: input, shape index: {}]
  %s1 = inlined_call_operand.hbm [shape: f32[8,128], index: 1, kind: output, shape index: {}]
  %s2 = sld [smem:[#allocation0]]
  $region18: #{tpu_custom_call.1} parent=0
    _
  %s4 = ssub.s32 1, %s2
  %s5 = scalar_select 0, %s4, %s2
  $region1: #{tpu_custom_call.1} parent=0
    #allocation2 [shape = 'u8[4096]{0}', space=vmem, size = 0x1000, scoped, tag = 'input window, operand 0, single buffered']
    #allocation3 [shape = 's32[1]{0}', space=sflag, size = 0x4, scoped, tag = 'scoped memory for tpu_custom_call.1']
    #allocation4 [shape = 's32[1]{0}', space=sflag, size = 0x4, scoped, tag = 'scoped memory for tpu_custom_call.1']
    #allocation5 [shape = 'u8[4096]{0}', space=vmem, size = 0x1000, scoped, tag = 'output window, operand 0, single buffered']
    %6 = vsyncpa [#allocation3], 0
    %7 = vsyncpa [#allocation4], 0
    // Predicated region
    $region2: #{tpu_custom_call.1} parent=1 // pred_check
      _
    $region3: #{tpu_custom_call.1} parent=1 // pred_check_branch
      %9 = sbr.rel (0) target = $region5
    $region4: #{tpu_custom_call.1} parent=1 // pred_region
      %s11 = ssub.s32 128, 128
      %12 = vsyncadd [#allocation3], %s11
      %s14 = sshll.u32 [#allocation2], 4
      %s15 = int_to_ptr.vmem [resolvable:$true] %s14
      %17 = dma.hbm_to_vmem [thread:$0]  %s0, 128, %s15, [#allocation3]
    $region5: #{tpu_custom_call.1} parent=1 // pred_fallthru
      _
    // Predicated region
    $region6: #{tpu_custom_call.1} parent=1 // pred_check
      _
    $region7: #{tpu_custom_call.1} parent=1 // pred_check_branch
      %19 = sbr.rel (0) target = $region9
    $region8: #{tpu_custom_call.1} parent=1 // pred_region
      %20 = dma.done [#allocation3], 128
    $region9: #{tpu_custom_call.1} parent=1 // pred_fallthru
      _
    %v21 = vld [vmem:[#allocation2] sm:$0xff]
    %22 = vst [vmem:[#allocation5] sm:$0xff] %v21
    // Predicated region
    $region10: #{tpu_custom_call.1} parent=1 // pred_check
      _
    $region11: #{tpu_custom_call.1} parent=1 // pred_check_branch
      %24 = sbr.rel (0) target = $region13
    $region12: #{tpu_custom_call.1} parent=1 // pred_region
      %s26 = ssub.s32 128, 128
      %27 = vsyncadd [#allocation4], %s26
      %s29 = sshll.u32 [#allocation5], 4
      %s30 = int_to_ptr.vmem [resolvable:$true] %s29
      %32 = dma.vmem_to_hbm [thread:$0]  %s30, 128, %s1, [#allocation4]
    $region13: #{tpu_custom_call.1} parent=1 // pred_fallthru
      _
    // Predicated region
    $region14: #{tpu_custom_call.1} parent=1 // pred_check
      _
    $region15: #{tpu_custom_call.1} parent=1 // pred_check_branch
      %34 = sbr.rel (0) target = $region17
    $region16: #{tpu_custom_call.1} parent=1 // pred_region
      %35 = dma.done [#allocation4], 128
    $region17: #{tpu_custom_call.1} parent=1 // pred_fallthru
      _
    %36 = vsyncpa [#allocation3], 1
    %37 = vsyncpa [#allocation4], 1

// kernel: quaternion_transformer_block.3
$region0: #{quaternion_transformer_block.3}
  #allocation0 [shape = 'u32[]', space=smem, size = 0x4, offset = 0x4, fixed_abs, tag = 'smem constant byte address 0x4 - core index']
  #allocation1 [shape = 'u32[144,128]{1,0:T(1,128)}', space=vmem, size = 0x12000, scoped, tag = 'internal scratch']
  %s0 = inlined_call_operand.vmem [shape: f32[2,8,64], index: 0, kind: input, shape index: {}]
  %s1 = inlined_call_operand.vmem [shape: f32[64,128], index: 1, kind: input, shape index: {}]
  %s2 = inlined_call_operand.vmem [shape: f32[4,8,32], index: 2, kind: input, shape index: {}]
  %s3 = inlined_call_operand.vmem [shape: f32[128,384], index: 3, kind: input, shape index: {}]
  %s4 = inlined_call_operand.vmem [shape: f32[1,384], index: 4, kind: input, shape index: {}]
  %s5 = inlined_call_operand.vmem [shape: f32[2,8,128], index: 5, kind: output, shape index: {0}]
  %s6 = inlined_call_operand.vmem [shape: f32[2,8,128], index: 6, kind: output, shape index: {1}]
  %s7 = inlined_call_operand.vmem [shape: f32[2,8,256], index: 7, kind: output, shape index: {2}]
  %8 = xla_tuple %s5, %s6, %s7
  %s9 = sld [smem:[#allocation0]]
  $region69: #{quaternion_transformer_block.3} parent=0
    _
  %s11 = ssub.s32 1, %s9
  %s12 = scalar_select 0, %s11, %s9
  loop: start=0, step=1, limit=4
  $region2: #{quaternion_transformer_block.3} parent=0 // loop_pre_header
    _
  $region3: #{quaternion_transformer_block.3} parent=0 // loop_header
    %s14 = sphi 0, %s18
    %p15 = scmp.ge.s32.totalorder %s14, 4
    %s21 = sphi 0, %s33
    %s22 = sphi 0, %s29
    %s23 = sphi 0, %s21
    %s24 = sphi 0, %s22
    %s25 = sphi 0, %s23
    %s26 = sphi 0, %s24
    %s38 = sphi 0, %s40
    %s41 = sphi 0, %s38
    %s42 = sphi 0, %s41
    %s58 = sphi 0, %s42
    %s62 = sphi 0, %s62
    %s64 = sphi 0, %s62
    %s65 = sphi 0, %s64
    %s79 = sphi 0, %s65
    %s85 = sphi 0, %s87
    %s88 = sphi 0, %s85
    %s89 = sphi 0, %s88
    %s105 = sphi 0, %s89
    %s109 = sphi 0, %s109
    %s111 = sphi 0, %s109
    %s112 = sphi 0, %s111
    %s126 = sphi 0, %s112
    %s130 = sphi 0, %s130
    %s132 = sphi 0, %s130
    %s133 = sphi 0, %s132
    %s147 = sphi 0, %s133
    %s155 = sphi 0, %s157
    %s158 = sphi 0, %s155
    %s159 = sphi 0, %s158
    %s175 = sphi 0, %s159
    %s183 = sphi 0, %s185
    %s186 = sphi 0, %s183
    %s187 = sphi 0, %s186
    %s203 = sphi 0, %s187
    %s211 = sphi 0, %s213
    %s214 = sphi 0, %s211
    %s215 = sphi 0, %s214
    %s231 = sphi 0, %s215
  $region4: #{quaternion_transformer_block.3} parent=0 // loop_header_branch
    %17 = sbr.rel (%p15) target = $region8
  $region5: #{quaternion_transformer_block.3} parent=0 // loop_body
    %s19 = ssub.s32 %s14, 1
    %s20 = ssub.s32 %s14, 2
    %s27 = sadd.s32 1, %s22
    %p28 = scmp.ge.s32.totalorder %s27, 2
    %s29 = scalar_select %p28, 0, %s27
    %s30 = sadd.s32 1, %s21
    %s31 = scalar_select %p28, %s30, %s21
    %p32 = scmp.ge.s32.totalorder %s31, 1
    %s33 = scalar_select %p32, 0, %s31
    %s34 = ssub.s32 %s22, %s29
    %s35 = ssub.s32 %s21, %s33
    %s36 = sor.u32 %s34, %s35
    %p37 = scmp.eq.s32.totalorder %s36, 0
    %s39 = sadd.s32 %s38, 1
    %s40 = scalar_select %p37, %s38, %s39
    %p43 = pneg %p37
    %p44 = scmp.eq.s32.totalorder %s14, 1
    %p45 = por %p43, %p44
    %p46 = scmp.ne.s32.totalorder %s38, %s41
    %p47 = scmp.eq.s32.totalorder %s14, 0
    %p48 = por %p46, %p47
    %p49 = scmp.ne.s32.totalorder %s38, %s41
    %p50 = scmp.eq.s32.totalorder %s19, 1
    %p51 = por %p49, %p50
    %p52 = scmp.ne.s32.totalorder %s41, %s42
    %p53 = scmp.eq.s32.totalorder %s19, 0
    %p54 = por %p52, %p53
    %p55 = scmp.ne.s32.totalorder %s41, %s42
    %p56 = scmp.eq.s32.totalorder %s20, 1
    %p57 = por %p55, %p56
    %p59 = scmp.ne.s32.totalorder %s42, %s58
    %p60 = scmp.eq.s32.totalorder %s20, 0
    %p61 = por %p59, %p60
    %s63 = sadd.s32 %s62, 1
    %p66 = scmp.eq.s32.totalorder %s14, 1
    %p67 = scmp.ne.s32.totalorder %s62, %s64
    %p68 = scmp.eq.s32.totalorder %s14, 0
    %p69 = por %p67, %p68
    %p70 = scmp.ne.s32.totalorder %s62, %s64
    %p71 = scmp.eq.s32.totalorder %s19, 1
    %p72 = por %p70, %p71
    %p73 = scmp.ne.s32.totalorder %s64, %s65
    %p74 = scmp.eq.s32.totalorder %s19, 0
    %p75 = por %p73, %p74
    %p76 = scmp.ne.s32.totalorder %s64, %s65
    %p77 = scmp.eq.s32.totalorder %s20, 1
    %p78 = por %p76, %p77
    %p80 = scmp.ne.s32.totalorder %s65, %s79
    %p81 = scmp.eq.s32.totalorder %s20, 0
    %p82 = por %p80, %p81
    %s83 = ssub.s32 %s21, %s33
    %p84 = scmp.eq.s32.totalorder %s83, 0
    %s86 = sadd.s32 %s85, 1
    %s87 = scalar_select %p84, %s85, %s86
    %p90 = pneg %p84
    %p91 = scmp.eq.s32.totalorder %s14, 1
    %p92 = por %p90, %p91
    %p93 = scmp.ne.s32.totalorder %s85, %s88
    %p94 = scmp.eq.s32.totalorder %s14, 0
    %p95 = por %p93, %p94
    %p96 = scmp.ne.s32.totalorder %s85, %s88
    %p97 = scmp.eq.s32.totalorder %s19, 1
    %p98 = por %p96, %p97
    %p99 = scmp.ne.s32.totalorder %s88, %s89
    %p100 = scmp.eq.s32.totalorder %s19, 0
    %p101 = por %p99, %p100
    %p102 = scmp.ne.s32.totalorder %s88, %s89
    %p103 = scmp.eq.s32.totalorder %s20, 1
    %p104 = por %p102, %p103
    %p106 = scmp.ne.s32.totalorder %s89, %s105
    %p107 = scmp.eq.s32.totalorder %s20, 0
    %p108 = por %p106, %p107
    %s110 = sadd.s32 %s109, 1
    %p113 = scmp.eq.s32.totalorder %s14, 1
    %p114 = scmp.ne.s32.totalorder %s109, %s111
    %p115 = scmp.eq.s32.totalorder %s14, 0
    %p116 = por %p114, %p115
    %p117 = scmp.ne.s32.totalorder %s109, %s111
    %p118 = scmp.eq.s32.totalorder %s19, 1
    %p119 = por %p117, %p118
    %p120 = scmp.ne.s32.totalorder %s111, %s112
    %p121 = scmp.eq.s32.totalorder %s19, 0
    %p122 = por %p120, %p121
    %p123 = scmp.ne.s32.totalorder %s111, %s112
    %p124 = scmp.eq.s32.totalorder %s20, 1
    %p125 = por %p123, %p124
    %p127 = scmp.ne.s32.totalorder %s112, %s126
    %p128 = scmp.eq.s32.totalorder %s20, 0
    %p129 = por %p127, %p128
    %s131 = sadd.s32 %s130, 1
    %p134 = scmp.eq.s32.totalorder %s14, 1
    %p135 = scmp.ne.s32.totalorder %s130, %s132
    %p136 = scmp.eq.s32.totalorder %s14, 0
    %p137 = por %p135, %p136
    %p138 = scmp.ne.s32.totalorder %s130, %s132
    %p139 = scmp.eq.s32.totalorder %s19, 1
    %p140 = por %p138, %p139
    %p141 = scmp.ne.s32.totalorder %s132, %s133
    %p142 = scmp.eq.s32.totalorder %s19, 0
    %p143 = por %p141, %p142
    %p144 = scmp.ne.s32.totalorder %s132, %s133
    %p145 = scmp.eq.s32.totalorder %s20, 1
    %p146 = por %p144, %p145
    %p148 = scmp.ne.s32.totalorder %s133, %s147
    %p149 = scmp.eq.s32.totalorder %s20, 0
    %p150 = por %p148, %p149
    %s151 = ssub.s32 %s22, %s29
    %s152 = ssub.s32 %s21, %s33
    %s153 = sor.u32 %s151, %s152
    %p154 = scmp.eq.s32.totalorder %s153, 0
    %s156 = sadd.s32 %s155, 1
    %s157 = scalar_select %p154, %s155, %s156
    %p160 = pneg %p154
    %p161 = scmp.eq.s32.totalorder %s14, 1
    %p162 = por %p160, %p161
    %p163 = scmp.ne.s32.totalorder %s155, %s158
    %p164 = scmp.eq.s32.totalorder %s14, 0
    %p165 = por %p163, %p164
    %p166 = scmp.ne.s32.totalorder %s155, %s158
    %p167 = scmp.eq.s32.totalorder %s19, 1
    %p168 = por %p166, %p167
    %p169 = scmp.ne.s32.totalorder %s158, %s159
    %p170 = scmp.eq.s32.totalorder %s19, 0
    %p171 = por %p169, %p170
    %p172 = scmp.ne.s32.totalorder %s158, %s159
    %p173 = scmp.eq.s32.totalorder %s20, 1
    %p174 = por %p172, %p173
    %p176 = scmp.ne.s32.totalorder %s159, %s175
    %p177 = scmp.eq.s32.totalorder %s20, 0
    %p178 = por %p176, %p177
    %s179 = ssub.s32 %s22, %s29
    %s180 = ssub.s32 %s21, %s33
    %s181 = sor.u32 %s179, %s180
    %p182 = scmp.eq.s32.totalorder %s181, 0
    %s184 = sadd.s32 %s183, 1
    %s185 = scalar_select %p182, %s183, %s184
    %p188 = pneg %p182
    %p189 = scmp.eq.s32.totalorder %s14, 1
    %p190 = por %p188, %p189
    %p191 = scmp.ne.s32.totalorder %s183, %s186
    %p192 = scmp.eq.s32.totalorder %s14, 0
    %p193 = por %p191, %p192
    %p194 = scmp.ne.s32.totalorder %s183, %s186
    %p195 = scmp.eq.s32.totalorder %s19, 1
    %p196 = por %p194, %p195
    %p197 = scmp.ne.s32.totalorder %s186, %s187
    %p198 = scmp.eq.s32.totalorder %s19, 0
    %p199 = por %p197, %p198
    %p200 = scmp.ne.s32.totalorder %s186, %s187
    %p201 = scmp.eq.s32.totalorder %s20, 1
    %p202 = por %p200, %p201
    %p204 = scmp.ne.s32.totalorder %s187, %s203
    %p205 = scmp.eq.s32.totalorder %s20, 0
    %p206 = por %p204, %p205
    %s207 = ssub.s32 %s22, %s29
    %s208 = ssub.s32 %s21, %s33
    %s209 = sor.u32 %s207, %s208
    %p210 = scmp.eq.s32.totalorder %s209, 0
    %s212 = sadd.s32 %s211, 1
    %s213 = scalar_select %p210, %s211, %s212
    %p216 = pneg %p210
    %p217 = scmp.eq.s32.totalorder %s14, 1
    %p218 = por %p216, %p217
    %p219 = scmp.ne.s32.totalorder %s211, %s214
    %p220 = scmp.eq.s32.totalorder %s14, 0
    %p221 = por %p219, %p220
    %p222 = scmp.ne.s32.totalorder %s211, %s214
    %p223 = scmp.eq.s32.totalorder %s19, 1
    %p224 = por %p222, %p223
    %p225 = scmp.ne.s32.totalorder %s214, %s215
    %p226 = scmp.eq.s32.totalorder %s19, 0
    %p227 = por %p225, %p226
    %p228 = scmp.ne.s32.totalorder %s214, %s215
    %p229 = scmp.eq.s32.totalorder %s20, 1
    %p230 = por %p228, %p229
    %p232 = scmp.ne.s32.totalorder %s215, %s231
    %p233 = scmp.eq.s32.totalorder %s20, 0
    %p234 = por %p232, %p233
    %p235 = scmp.le.s32.totalorder 1, %s14
    %p236 = scmp.lt.s32.totalorder %s14, 3
    %p237 = pnand %p235, %p236
    %p238 = pneg %p237
    // Predicated region
    $region9: #{quaternion_transformer_block.3} parent=5 // pred_check
      _
    $region10: #{quaternion_transformer_block.3} parent=5 // pred_check_branch
      %240 = sbr.rel (%p237) target = $region12
    $region11: #{quaternion_transformer_block.3} parent=5 // pred_region
      %s241 = ssub.s32 %s14, 1
      // Predicated region
      $region13: #{quaternion_transformer_block.3} parent=11 // pred_check
        %p242 = pneg %p75
      $region14: #{quaternion_transformer_block.3} parent=11 // pred_check_branch
        %244 = sbr.rel (%p242) target = $region16
      $region15: #{quaternion_transformer_block.3} parent=11 // pred_region
        _
      $region16: #{quaternion_transformer_block.3} parent=11 // pred_fallthru
        _
      // Predicated region
      $region17: #{quaternion_transformer_block.3} parent=11 // pred_check
        %p245 = pneg %p101
      $region18: #{quaternion_transformer_block.3} parent=11 // pred_check_branch
        %247 = sbr.rel (%p245) target = $region20
      $region19: #{quaternion_transformer_block.3} parent=11 // pred_region
        %p248 = scmp.lt.s32.totalorder %s23, 0
        %s249 = scalar_select %p248, %s23, 0
        %s250 = smul.addr %s249, 8
        %s251 = scalar_lea.vmem %s2, %s250
      $region20: #{quaternion_transformer_block.3} parent=11 // pred_fallthru
        _
      // Predicated region
      $region21: #{quaternion_transformer_block.3} parent=11 // pred_check
        %p252 = pneg %p122
      $region22: #{quaternion_transformer_block.3} parent=11 // pred_check_branch
        %254 = sbr.rel (%p252) target = $region24
      $region23: #{quaternion_transformer_block.3} parent=11 // pred_region
        _
      $region24: #{quaternion_transformer_block.3} parent=11 // pred_fallthru
        _
      // Predicated region
      $region25: #{quaternion_transformer_block.3} parent=11 // pred_check
        %p255 = pneg %p143
      $region26: #{quaternion_transformer_block.3} parent=11 // pred_check_branch
        %257 = sbr.rel (%p255) target = $region28
      $region27: #{quaternion_transformer_block.3} parent=11 // pred_region
        _
      $region28: #{quaternion_transformer_block.3} parent=11 // pred_fallthru
        _
    $region12: #{quaternion_transformer_block.3} parent=5 // pred_fallthru
      _
    %p258 = scmp.lt.s32.totalorder %s14, 2
    // Predicated region
    $region29: #{quaternion_transformer_block.3} parent=5 // pred_check
      %p259 = pneg %p258
    $region30: #{quaternion_transformer_block.3} parent=5 // pred_check_branch
      %261 = sbr.rel (%p259) target = $region32
    $region31: #{quaternion_transformer_block.3} parent=5 // pred_region
      // Predicated region
      $region33: #{quaternion_transformer_block.3} parent=31 // pred_check
        %p262 = pneg %p48
      $region34: #{quaternion_transformer_block.3} parent=31 // pred_check_branch
        %264 = sbr.rel (%p262) target = $region36
      $region35: #{quaternion_transformer_block.3} parent=31 // pred_region
        %p265 = scmp.lt.s32.totalorder %s22, 1
        %s266 = scalar_select %p265, %s22, 1
        %p267 = scmp.lt.s32.totalorder %s21, 0
        %s268 = scalar_select %p267, %s21, 0
        %s269 = sadd.s32 %s268, %s266
        %s270 = smul.addr %s269, 8
        %s271 = scalar_lea.vmem %s0, %s270
      $region36: #{quaternion_transformer_block.3} parent=31 // pred_fallthru
        _
    $region32: #{quaternion_transformer_block.3} parent=5 // pred_fallthru
      _
    %p272 = scmp.le.s32.totalorder 1, %s14
    %p273 = scmp.lt.s32.totalorder %s14, 3
    %p274 = pnand %p272, %p273
    %p275 = pneg %p274
    // Predicated region
    $region37: #{quaternion_transformer_block.3} parent=5 // pred_check
      _
    $region38: #{quaternion_transformer_block.3} parent=5 // pred_check_branch
      %277 = sbr.rel (%p274) target = $region40
    $region39: #{quaternion_transformer_block.3} parent=5 // pred_region
      %s278 = ssub.s32 %s14, 1
      %p279 = scmp.lt.s32.totalorder %s24, 1
      %s280 = scalar_select %p279, %s24, 1
      %p281 = scmp.lt.s32.totalorder %s23, 0
      %s282 = scalar_select %p281, %s23, 0
      %s283 = sadd.s32 %s282, %s280
      %s284 = smul.addr %s283, 8
      %s285 = scalar_lea.vmem %s0, %s284
      %p286 = pneg %p54
      %p287 = pneg %p51
      %p288 = pneg %p75
      %p289 = pneg %p72
      %p290 = scmp.lt.s32.totalorder %s23, 0
      %s291 = scalar_select %p290, %s23, 0
      %s292 = smul.addr %s291, 8
      %s293 = scalar_lea.vmem %s2, %s292
      %p294 = pneg %p101
      %p295 = pneg %p98
      %p296 = pneg %p122
      %p297 = pneg %p119
      %p298 = pneg %p143
      %p299 = pneg %p140
      %p300 = pneg %p171
      %p301 = pneg %p168
      %p302 = scmp.lt.s32.totalorder %s24, 1
      %s303 = scalar_select %p302, %s24, 1
      %p304 = scmp.lt.s32.totalorder %s23, 0
      %s305 = scalar_select %p304, %s23, 0
      %s306 = sadd.s32 %s305, %s303
      %s307 = smul.addr %s306, 8
      %s308 = scalar_lea.vmem %s5, %s307
      %p309 = pneg %p199
      %p310 = pneg %p196
      %p311 = scmp.lt.s32.totalorder %s24, 1
      %s312 = scalar_select %p311, %s24, 1
      %p313 = scmp.lt.s32.totalorder %s23, 0
      %s314 = scalar_select %p313, %s23, 0
      %s315 = sadd.s32 %s314, %s312
      %s316 = smul.addr %s315, 8
      %s317 = scalar_lea.vmem %s6, %s316
      %p318 = pneg %p227
      %p319 = pneg %p224
      %p320 = scmp.lt.s32.totalorder %s24, 1
      %s321 = scalar_select %p320, %s24, 1
      %p322 = scmp.lt.s32.totalorder %s23, 0
      %s323 = scalar_select %p322, %s23, 0
      %s324 = smul.addr %s323, 2
      %s325 = smul.addr %s321, 2
      %s326 = sadd.s32 %s324, %s325
      %s327 = smul.addr %s326, 8
      %s328 = scalar_lea.vmem %s7, %s327
      %p329 = scmp.lt.s32.totalorder %s24, 1
      %s330 = scalar_select %p329, %s24, 1
      %p331 = scmp.lt.s32.totalorder %s23, 0
      %s332 = scalar_select %p331, %s23, 0
      %s333 = sadd.s32 %s332, %s330
      %s334 = smul.addr %s333, 8
      %s335 = scalar_lea.vmem %s0, %s334
      %p336 = scmp.lt.s32.totalorder %s23, 0
      %s337 = scalar_select %p336, %s23, 0
      %s338 = smul.addr %s337, 8
      %s339 = scalar_lea.vmem %s2, %s338
      %p340 = scmp.lt.s32.totalorder %s24, 1
      %s341 = scalar_select %p340, %s24, 1
      %p342 = scmp.lt.s32.totalorder %s23, 0
      %s343 = scalar_select %p342, %s23, 0
      %s344 = sadd.s32 %s343, %s341
      %s345 = smul.addr %s344, 8
      %s346 = scalar_lea.vmem %s5, %s345
      %p347 = scmp.lt.s32.totalorder %s24, 1
      %s348 = scalar_select %p347, %s24, 1
      %p349 = scmp.lt.s32.totalorder %s23, 0
      %s350 = scalar_select %p349, %s23, 0
      %s351 = sadd.s32 %s350, %s348
      %s352 = smul.addr %s351, 8
      %s353 = scalar_lea.vmem %s6, %s352
      %p354 = scmp.lt.s32.totalorder %s24, 1
      %s355 = scalar_select %p354, %s24, 1
      %p356 = scmp.lt.s32.totalorder %s23, 0
      %s357 = scalar_select %p356, %s23, 0
      %s358 = smul.addr %s357, 2
      %s359 = smul.addr %s355, 2
      %s360 = sadd.s32 %s358, %s359
      %s361 = smul.addr %s360, 8
      %s362 = scalar_lea.vmem %s7, %s361
      %v363 = vld [vmem:[%s335] sm:$0xff]
      %v364 = vld [vmem:[%s1] sm:$0xff]
      %v365 = vld [vmem:[%s1 + $0x8] sm:$0xff]
      %v366 = vld [vmem:[%s1 + $0x10] sm:$0xff]
      %v367 = vld [vmem:[%s1 + $0x18] sm:$0xff]
      %v368 = vld [vmem:[%s1 + $0x20] sm:$0xff]
      %v369 = vld [vmem:[%s1 + $0x28] sm:$0xff]
      %v370 = vld [vmem:[%s1 + $0x30] sm:$0xff]
      %v371 = vld [vmem:[%s1 + $0x38] sm:$0xff]
      %vm372 = vcmask 523264
      %v374 = vsel %vm372, %v363, 0
      %376 = vmatprep.subr.mxu0 0.0
      %377 = vmatpush1.msra.mxu0 %v364
      %378 = vmatprep.subr.mxu0 0.0
      %379 = vmatpush1.msra.mxu0 %v365
      %380 = vmatprep.subr.mxu0 0.0
      %381 = vmatpush1.msra.mxu0 %v366
      %382 = vmatprep.subr.mxu0 0.0
      %383 = vmatpush1.msra.mxu0 %v367
      %384 = vmatprep.subr.mxu0 0.0
      %385 = vmatpush1.msra.mxu0 %v368
      %386 = vmatprep.subr.mxu0 0.0
      %387 = vmatpush1.msra.mxu0 %v369
      %388 = vmatprep.subr.mxu0 0.0
      %389 = vmatpush1.msra.mxu0 %v370
      %390 = vmatprep.subr.mxu0 0.0
      %391 = vmatpush1.msra.mxu0 %v371
      %392 = vmatprep.subr.mxu0 0.0
      %393 = vmatpush1.msra.mxu0 0.0
      %394 = vmatprep.subr.mxu0 0.0
      %395 = vmatpush1.msra.mxu0 0.0
      %396 = vmatprep.subr.mxu0 0.0
      %397 = vmatpush1.msra.mxu0 0.0
      %398 = vmatprep.subr.mxu0 0.0
      %399 = vmatpush1.msra.mxu0 0.0
      %400 = vmatprep.subr.mxu0 0.0
      %401 = vmatpush1.msra.mxu0 0.0
      %402 = vmatprep.subr.mxu0 0.0
      %403 = vmatpush1.msra.mxu0 0.0
      %404 = vmatprep.subr.mxu0 0.0
      %405 = vmatpush1.msra.mxu0 0.0
      %406 = vmatprep.subr.mxu0 0.0
      %407 = vmatpush1.msra.mxu0 0.0
      %408 = vmatprep.subr.mxu0 0.0
      %409 = vmatpush1.msra.mxu0 0.0
      %410 = vmatprep.subr.mxu0 0.0
      %411 = vmatpush1.msra.mxu0 0.0
      %412 = vmatprep.subr.mxu0 0.0
      %413 = vmatpush1.msra.mxu0 0.0
      %414 = vmatprep.subr.mxu0 0.0
      %415 = vmatpush1.msra.mxu0 0.0
      %416 = vmatprep.subr.mxu0 0.0
      %417 = vmatpush1.msra.mxu0 0.0
      %418 = vmatprep.subr.mxu0 0.0
      %419 = vmatpush1.msra.mxu0 0.0
      %420 = vmatprep.subr.mxu0 0.0
      %421 = vmatpush1.msra.mxu0 0.0
      %422 = vmatprep.subr.mxu0 0.0
      %423 = vmatpush1.msra.mxu0 0.0
      %424 = vmatprep.subr.mxu0 0.0
      %425 = vmatpush1.msra.mxu0 0.0
      %426 = vmatprep.subr.mxu0 0.0
      %427 = vmatpush1.msra.mxu0 0.0
      %428 = vmatprep.subr.mxu0 0.0
      %429 = vmatpush1.msra.mxu0 0.0
      %430 = vmatprep.subr.mxu0 0.0
      %431 = vmatpush1.msra.mxu0 0.0
      %432 = vmatprep.subr.mxu0 0.0
      %433 = vmatpush1.msra.mxu0 0.0
      %434 = vmatprep.subr.mxu0 0.0
      %435 = vmatpush1.msra.mxu0 0.0
      %436 = vmatprep.subr.mxu0 0.0
      %437 = vmatpush1.msra.mxu0 0.0
      %438 = vmatprep.subr.mxu0 0.0
      %439 = vmatpush1.msra.mxu0 0.0
      %440 = vmatprep.mubr.f32.mxu0 0.0
      %441 = vmatmul.mubr.f32.gmra.mrb[0].mxu0 %v374
      %v442 = vpop.f32.mrb[0].mxu0
      %v443 = vadd.f32 0.0, %v442
      %v444 = vpop.f32.mrb[0].mxu0
      %445 = vdwg.mxu0
      %v446 = vld [vmem:[%s339] sm:$0xff]
      %s447 = scalar_lea.vmem %s339, 8
      %v448 = vld [vmem:[%s447] sm:$0xff]
      %s449 = scalar_lea.vmem %s339, 16
      %v450 = vld [vmem:[%s449] sm:$0xff]
      %s451 = scalar_lea.vmem %s339, 24
      %v452 = vld [vmem:[%s451] sm:$0xff]
      %v453 = vmul.f32 %v446, %v443
      %455 = vrot.lane.b32.xlu0 %v443, 96
      %v456 = vpop.permute.xlu0 %455
      %v458 = vmul.f32 %v448, %v456
      %v459 = vsub.f32 %v453, %v458
      %460 = vrot.lane.b32.xlu0 %v443, 64
      %v461 = vpop.permute.xlu0 %460
      %v463 = vmul.f32 %v450, %v461
      %v464 = vsub.f32 %v459, %v463
      %465 = vrot.lane.b32.xlu0 %v443, 32
      %v466 = vpop.permute.xlu0 %465
      %v468 = vmul.f32 %v452, %v466
      %v469 = vsub.f32 %v464, %v468
      %v470 = vmul.f32 %v448, %v443
      %v471 = vmul.f32 %v446, %v456
      %v472 = vadd.f32 %v470, %v471
      %v473 = vmul.f32 %v452, %v461
      %v474 = vsub.f32 %v472, %v473
      %v475 = vmul.f32 %v450, %v466
      %v476 = vadd.f32 %v474, %v475
      %v477 = vmul.f32 %v450, %v443
      %v478 = vmul.f32 %v452, %v456
      %v479 = vadd.f32 %v477, %v478
      %v480 = vmul.f32 %v446, %v461
      %v481 = vadd.f32 %v479, %v480
      %v482 = vmul.f32 %v448, %v466
      %v483 = vsub.f32 %v481, %v482
      %v484 = vmul.f32 %v452, %v443
      %v485 = vmul.f32 %v450, %v456
      %v486 = vsub.f32 %v484, %v485
      %v487 = vmul.f32 %v448, %v461
      %v488 = vadd.f32 %v486, %v487
      %v489 = vmul.f32 %v446, %v466
      %v490 = vadd.f32 %v488, %v489
      %492 = vrot.lane.b32.xlu0 %v476, 32
      %v493 = vpop.permute.xlu0 %492
      %496 = vrot.lane.b32.xlu0 %v483, 64
      %v497 = vpop.permute.xlu0 %496
      %500 = vrot.lane.b32.xlu0 %v490, 96
      %v501 = vpop.permute.xlu0 %500
      %vm503 = vcmask 261120
      %v504 = vsel %vm503, %v469, %v493
      %v505 = vsel %vm372, %v504, %v497
      %vm506 = vcmask 785408
      %v507 = vsel %vm506, %v505, %v501
      %508 = vst [vmem:[%s346] sm:$0xff] %v507
      %v509 = vld [vmem:[%s3] sm:$0xff]
      %v510 = vld [vmem:[%s3 + $0x8] sm:$0xff]
      %v511 = vld [vmem:[%s3 + $0x10] sm:$0xff]
      %v512 = vld [vmem:[%s3 + $0x18] sm:$0xff]
      %v513 = vld [vmem:[%s3 + $0x20] sm:$0xff]
      %v514 = vld [vmem:[%s3 + $0x28] sm:$0xff]
      %v515 = vld [vmem:[%s3 + $0x30] sm:$0xff]
      %v516 = vld [vmem:[%s3 + $0x38] sm:$0xff]
      %v517 = vld [vmem:[%s3 + $0x40] sm:$0xff]
      %v518 = vld [vmem:[%s3 + $0x48] sm:$0xff]
      %v519 = vld [vmem:[%s3 + $0x50] sm:$0xff]
      %v520 = vld [vmem:[%s3 + $0x58] sm:$0xff]
      %v521 = vld [vmem:[%s3 + $0x60] sm:$0xff]
      %v522 = vld [vmem:[%s3 + $0x68] sm:$0xff]
      %v523 = vld [vmem:[%s3 + $0x70] sm:$0xff]
      %v524 = vld [vmem:[%s3 + $0x78] sm:$0xff]
      %v525 = vld [vmem:[%s3 + $0x80] sm:$0xff]
      %v526 = vld [vmem:[%s3 + $0x88] sm:$0xff]
      %v527 = vld [vmem:[%s3 + $0x90] sm:$0xff]
      %v528 = vld [vmem:[%s3 + $0x98] sm:$0xff]
      %v529 = vld [vmem:[%s3 + $0xa0] sm:$0xff]
      %v530 = vld [vmem:[%s3 + $0xa8] sm:$0xff]
      %v531 = vld [vmem:[%s3 + $0xb0] sm:$0xff]
      %v532 = vld [vmem:[%s3 + $0xb8] sm:$0xff]
      %v533 = vld [vmem:[%s3 + $0xc0] sm:$0xff]
      %v534 = vld [vmem:[%s3 + $0xc8] sm:$0xff]
      %v535 = vld [vmem:[%s3 + $0xd0] sm:$0xff]
      %v536 = vld [vmem:[%s3 + $0xd8] sm:$0xff]
      %v537 = vld [vmem:[%s3 + $0xe0] sm:$0xff]
      %v538 = vld [vmem:[%s3 + $0xe8] sm:$0xff]
      %v539 = vld [vmem:[%s3 + $0xf0] sm:$0xff]
      %v540 = vld [vmem:[%s3 + $0xf8] sm:$0xff]
      %v541 = vld [vmem:[%s3 + $0x100] sm:$0xff]
      %v542 = vld [vmem:[%s3 + $0x108] sm:$0xff]
      %v543 = vld [vmem:[%s3 + $0x110] sm:$0xff]
      %v544 = vld [vmem:[%s3 + $0x118] sm:$0xff]
      %v545 = vld [vmem:[%s3 + $0x120] sm:$0xff]
      %v546 = vld [vmem:[%s3 + $0x128] sm:$0xff]
      %v547 = vld [vmem:[%s3 + $0x130] sm:$0xff]
      %v548 = vld [vmem:[%s3 + $0x138] sm:$0xff]
      %v549 = vld [vmem:[%s3 + $0x140] sm:$0xff]
      %v550 = vld [vmem:[%s3 + $0x148] sm:$0xff]
      %v551 = vld [vmem:[%s3 + $0x150] sm:$0xff]
      %v552 = vld [vmem:[%s3 + $0x158] sm:$0xff]
      %v553 = vld [vmem:[%s3 + $0x160] sm:$0xff]
      %v554 = vld [vmem:[%s3 + $0x168] sm:$0xff]
      %v555 = vld [vmem:[%s3 + $0x170] sm:$0xff]
      %v556 = vld [vmem:[%s3 + $0x178] sm:$0xff]
      %v557 = vld [vmem:[%s4] sm:$0x7]
      %v559 = vlaneseq
      %v560 = vshrl.u32 %v559, 7
      %v561 = vsub.s32 0, %v560
      %v562 = vrot.slane %v557, %v561
      %v563 = vlaneseq
      %v564 = vshrl.u32 %v563, 7
      %v565 = vsub.s32 1, %v564
      %v566 = vrot.slane %v557, %v565
      %v567 = vlaneseq
      %v568 = vshrl.u32 %v567, 7
      %v569 = vsub.s32 2, %v568
      %v570 = vrot.slane %v557, %v569
      %574 = vmatprep.subr.mxu0 %v510
      %575 = vmatpush1.msra.mxu0 %v509
      %576 = vmatprep.subr.mxu0 %v513
      %577 = vmatpush1.msra.mxu0 %v512
      %578 = vmatprep.subr.mxu0 %v516
      %579 = vmatpush1.msra.mxu0 %v515
      %580 = vmatprep.subr.mxu0 %v519
      %581 = vmatpush1.msra.mxu0 %v518
      %582 = vmatprep.subr.mxu0 %v522
      %583 = vmatpush1.msra.mxu0 %v521
      %584 = vmatprep.subr.mxu0 %v525
      %585 = vmatpush1.msra.mxu0 %v524
      %586 = vmatprep.subr.mxu0 %v528
      %587 = vmatpush1.msra.mxu0 %v527
      %588 = vmatprep.subr.mxu0 %v531
      %589 = vmatpush1.msra.mxu0 %v530
      %590 = vmatprep.subr.mxu0 %v534
      %591 = vmatpush1.msra.mxu0 %v533
      %592 = vmatprep.subr.mxu0 %v537
      %593 = vmatpush1.msra.mxu0 %v536
      %594 = vmatprep.subr.mxu0 %v540
      %595 = vmatpush1.msra.mxu0 %v539
      %596 = vmatprep.subr.mxu0 %v543
      %597 = vmatpush1.msra.mxu0 %v542
      %598 = vmatprep.subr.mxu0 %v546
      %599 = vmatpush1.msra.mxu0 %v545
      %600 = vmatprep.subr.mxu0 %v549
      %601 = vmatpush1.msra.mxu0 %v548
      %602 = vmatprep.subr.mxu0 %v552
      %603 = vmatpush1.msra.mxu0 %v551
      %604 = vmatprep.subr.mxu0 %v555
      %605 = vmatpush1.msra.mxu0 %v554
      %606 = vmatprep.subr.mxu0 0.0
      %607 = vmatpush1.msra.mxu0 0.0
      %608 = vmatprep.subr.mxu0 0.0
      %609 = vmatpush1.msra.mxu0 0.0
      %610 = vmatprep.subr.mxu0 0.0
      %611 = vmatpush1.msra.mxu0 0.0
      %612 = vmatprep.subr.mxu0 0.0
      %613 = vmatpush1.msra.mxu0 0.0
      %614 = vmatprep.subr.mxu0 0.0
      %615 = vmatpush1.msra.mxu0 0.0
      %616 = vmatprep.subr.mxu0 0.0
      %617 = vmatpush1.msra.mxu0 0.0
      %618 = vmatprep.subr.mxu0 0.0
      %619 = vmatpush1.msra.mxu0 0.0
      %620 = vmatprep.subr.mxu0 0.0
      %621 = vmatpush1.msra.mxu0 0.0
      %622 = vmatprep.subr.mxu0 0.0
      %623 = vmatpush1.msra.mxu0 0.0
      %624 = vmatprep.subr.mxu0 0.0
      %625 = vmatpush1.msra.mxu0 0.0
      %626 = vmatprep.subr.mxu0 0.0
      %627 = vmatpush1.msra.mxu0 0.0
      %628 = vmatprep.subr.mxu0 0.0
      %629 = vmatpush1.msra.mxu0 0.0
      %630 = vmatprep.subr.mxu0 0.0
      %631 = vmatpush1.msra.mxu0 0.0
      %632 = vmatprep.subr.mxu0 0.0
      %633 = vmatpush1.msra.mxu0 0.0
      %634 = vmatprep.subr.mxu0 0.0
      %635 = vmatpush1.msra.mxu0 0.0
      %636 = vmatprep.subr.mxu0 0.0
      %637 = vmatpush1.msra.mxu0 0.0
      %638 = vmatprep.mubr.f32.mxu0 0.0
      %639 = vmatmul.mubr.f32.gmra.mrb[0].mxu0 %v507
      %v640 = vpop.f32.mrb[0].mxu0
      %v641 = vadd.f32 %v562, %v640
      %v642 = vpop.f32.mrb[0].mxu0
      %v643 = vadd.f32 %v566, %v642
      %644 = vdwg.mxu0
      %645 = vmatprep.subr.mxu0 0.0
      %646 = vmatpush1.msra.mxu0 %v511
      %647 = vmatprep.subr.mxu0 0.0
      %648 = vmatpush1.msra.mxu0 %v514
      %649 = vmatprep.subr.mxu0 0.0
      %650 = vmatpush1.msra.mxu0 %v517
      %651 = vmatprep.subr.mxu0 0.0
      %652 = vmatpush1.msra.mxu0 %v520
      %653 = vmatprep.subr.mxu0 0.0
      %654 = vmatpush1.msra.mxu0 %v523
      %655 = vmatprep.subr.mxu0 0.0
      %656 = vmatpush1.msra.mxu0 %v526
      %657 = vmatprep.subr.mxu0 0.0
      %658 = vmatpush1.msra.mxu0 %v529
      %659 = vmatprep.subr.mxu0 0.0
      %660 = vmatpush1.msra.mxu0 %v532
      %661 = vmatprep.subr.mxu0 0.0
      %662 = vmatpush1.msra.mxu0 %v535
      %663 = vmatprep.subr.mxu0 0.0
      %664 = vmatpush1.msra.mxu0 %v538
      %665 = vmatprep.subr.mxu0 0.0
      %666 = vmatpush1.msra.mxu0 %v541
      %667 = vmatprep.subr.mxu0 0.0
      %668 = vmatpush1.msra.mxu0 %v544
      %669 = vmatprep.subr.mxu0 0.0
      %670 = vmatpush1.msra.mxu0 %v547
      %671 = vmatprep.subr.mxu0 0.0
      %672 = vmatpush1.msra.mxu0 %v550
      %673 = vmatprep.subr.mxu0 0.0
      %674 = vmatpush1.msra.mxu0 %v553
      %675 = vmatprep.subr.mxu0 0.0
      %676 = vmatpush1.msra.mxu0 %v556
      %677 = vmatprep.subr.mxu0 0.0
      %678 = vmatpush1.msra.mxu0 0.0
      %679 = vmatprep.subr.mxu0 0.0
      %680 = vmatpush1.msra.mxu0 0.0
      %681 = vmatprep.subr.mxu0 0.0
      %682 = vmatpush1.msra.mxu0 0.0
      %683 = vmatprep.subr.mxu0 0.0
      %684 = vmatpush1.msra.mxu0 0.0
      %685 = vmatprep.subr.mxu0 0.0
      %686 = vmatpush1.msra.mxu0 0.0
      %687 = vmatprep.subr.mxu0 0.0
      %688 = vmatpush1.msra.mxu0 0.0
      %689 = vmatprep.subr.mxu0 0.0
      %690 = vmatpush1.msra.mxu0 0.0
      %691 = vmatprep.subr.mxu0 0.0
      %692 = vmatpush1.msra.mxu0 0.0
      %693 = vmatprep.subr.mxu0 0.0
      %694 = vmatpush1.msra.mxu0 0.0
      %695 = vmatprep.subr.mxu0 0.0
      %696 = vmatpush1.msra.mxu0 0.0
      %697 = vmatprep.subr.mxu0 0.0
      %698 = vmatpush1.msra.mxu0 0.0
      %699 = vmatprep.subr.mxu0 0.0
      %700 = vmatpush1.msra.mxu0 0.0
      %701 = vmatprep.subr.mxu0 0.0
      %702 = vmatpush1.msra.mxu0 0.0
      %703 = vmatprep.subr.mxu0 0.0
      %704 = vmatpush1.msra.mxu0 0.0
      %705 = vmatprep.subr.mxu0 0.0
      %706 = vmatpush1.msra.mxu0 0.0
      %707 = vmatprep.subr.mxu0 0.0
      %708 = vmatpush1.msra.mxu0 0.0
      %709 = vmatprep.mubr.f32.mxu0 0.0
      %710 = vmatmul.mubr.f32.gmra.mrb[0].mxu0 %v507
      %v711 = vpop.f32.mrb[0].mxu0
      %v712 = vadd.f32 %v570, %v711
      %v713 = vpop.f32.mrb[0].mxu0
      %714 = vdwg.mxu0
      %715 = vst [vmem:[%s353] sm:$0xff] %v641
      %716 = vst [vmem:[%s362] sm:$0xff] %v643
      %717 = vst [vmem:[%s362 + $0x8] sm:$0xff] %v712
      %p718 = scmp.lt.s32.totalorder %s24, 1
      %s719 = scalar_select %p718, %s24, 1
      %p720 = scmp.lt.s32.totalorder %s23, 0
      %s721 = scalar_select %p720, %s23, 0
      %s722 = sadd.s32 %s721, %s719
      %s723 = smul.addr %s722, 8
      %s724 = scalar_lea.vmem %s5, %s723
      %p725 = scmp.lt.s32.totalorder %s24, 1
      %s726 = scalar_select %p725, %s24, 1
      %p727 = scmp.lt.s32.totalorder %s23, 0
      %s728 = scalar_select %p727, %s23, 0
      %s729 = sadd.s32 %s728, %s726
      %s730 = smul.addr %s729, 8
      %s731 = scalar_lea.vmem %s6, %s730
      %p732 = scmp.lt.s32.totalorder %s24, 1
      %s733 = scalar_select %p732, %s24, 1
      %p734 = scmp.lt.s32.totalorder %s23, 0
      %s735 = scalar_select %p734, %s23, 0
      %s736 = smul.addr %s735, 2
      %s737 = smul.addr %s733, 2
      %s738 = sadd.s32 %s736, %s737
      %s739 = smul.addr %s738, 8
      %s740 = scalar_lea.vmem %s7, %s739
      // Predicated region
      $region41: #{quaternion_transformer_block.3} parent=39 // pred_check
        %p741 = pneg %p168
      $region42: #{quaternion_transformer_block.3} parent=39 // pred_check_branch
        %743 = sbr.rel (%p741) target = $region44
      $region43: #{quaternion_transformer_block.3} parent=39 // pred_region
        _
      $region44: #{quaternion_transformer_block.3} parent=39 // pred_fallthru
        _
      // Predicated region
      $region45: #{quaternion_transformer_block.3} parent=39 // pred_check
        %p744 = pneg %p196
      $region46: #{quaternion_transformer_block.3} parent=39 // pred_check_branch
        %746 = sbr.rel (%p744) target = $region48
      $region47: #{quaternion_transformer_block.3} parent=39 // pred_region
        _
      $region48: #{quaternion_transformer_block.3} parent=39 // pred_fallthru
        _
      // Predicated region
      $region49: #{quaternion_transformer_block.3} parent=39 // pred_check
        %p747 = pneg %p224
      $region50: #{quaternion_transformer_block.3} parent=39 // pred_check_branch
        %749 = sbr.rel (%p747) target = $region52
      $region51: #{quaternion_transformer_block.3} parent=39 // pred_region
        _
      $region52: #{quaternion_transformer_block.3} parent=39 // pred_fallthru
        _
    $region40: #{quaternion_transformer_block.3} parent=5 // pred_fallthru
      _
    %p750 = scmp.le.s32.totalorder 2, %s14
    // Predicated region
    $region53: #{quaternion_transformer_block.3} parent=5 // pred_check
      %p751 = pneg %p750
    $region54: #{quaternion_transformer_block.3} parent=5 // pred_check_branch
      %753 = sbr.rel (%p751) target = $region56
    $region55: #{quaternion_transformer_block.3} parent=5 // pred_region
      %s754 = ssub.s32 %s14, 2
      // Predicated region
      $region57: #{quaternion_transformer_block.3} parent=55 // pred_check
        %p755 = pneg %p174
      $region58: #{quaternion_transformer_block.3} parent=55 // pred_check_branch
        %757 = sbr.rel (%p755) target = $region60
      $region59: #{quaternion_transformer_block.3} parent=55 // pred_region
        %p758 = scmp.lt.s32.totalorder %s26, 1
        %s759 = scalar_select %p758, %s26, 1
        %p760 = scmp.lt.s32.totalorder %s25, 0
        %s761 = scalar_select %p760, %s25, 0
        %s762 = sadd.s32 %s761, %s759
        %s763 = smul.addr %s762, 8
        %s764 = scalar_lea.vmem %s5, %s763
      $region60: #{quaternion_transformer_block.3} parent=55 // pred_fallthru
        _
      // Predicated region
      $region61: #{quaternion_transformer_block.3} parent=55 // pred_check
        %p765 = pneg %p202
      $region62: #{quaternion_transformer_block.3} parent=55 // pred_check_branch
        %767 = sbr.rel (%p765) target = $region64
      $region63: #{quaternion_transformer_block.3} parent=55 // pred_region
        %p768 = scmp.lt.s32.totalorder %s26, 1
        %s769 = scalar_select %p768, %s26, 1
        %p770 = scmp.lt.s32.totalorder %s25, 0
        %s771 = scalar_select %p770, %s25, 0
        %s772 = sadd.s32 %s771, %s769
        %s773 = smul.addr %s772, 8
        %s774 = scalar_lea.vmem %s6, %s773
      $region64: #{quaternion_transformer_block.3} parent=55 // pred_fallthru
        _
      // Predicated region
      $region65: #{quaternion_transformer_block.3} parent=55 // pred_check
        %p775 = pneg %p230
      $region66: #{quaternion_transformer_block.3} parent=55 // pred_check_branch
        %777 = sbr.rel (%p775) target = $region68
      $region67: #{quaternion_transformer_block.3} parent=55 // pred_region
        %p778 = scmp.lt.s32.totalorder %s26, 1
        %s779 = scalar_select %p778, %s26, 1
        %p780 = scmp.lt.s32.totalorder %s25, 0
        %s781 = scalar_select %p780, %s25, 0
        %s782 = smul.addr %s781, 2
        %s783 = smul.addr %s779, 2
        %s784 = sadd.s32 %s782, %s783
        %s785 = smul.addr %s784, 8
        %s786 = scalar_lea.vmem %s7, %s785
      $region68: #{quaternion_transformer_block.3} parent=55 // pred_fallthru
        _
    $region56: #{quaternion_transformer_block.3} parent=5 // pred_fallthru
      _
  $region6: #{quaternion_transformer_block.3} parent=0 // loop_footer
    %s18 = sadd.s32 1, %s14
  $region7: #{quaternion_transformer_block.3} parent=0 // loop_footer_branch
    %13 = sbr.rel target = $region3
  $region8: #{quaternion_transformer_block.3} parent=0 // loop_exit
    _

// kernel: quaternion_transformer_block.4
$region0: #{quaternion_transformer_block.4}
  #allocation0 [shape = 'u32[]', space=smem, size = 0x4, offset = 0x4, fixed_abs, tag = 'smem constant byte address 0x4 - core index']
  #allocation1 [shape = 'u32[144,128]{1,0:T(1,128)}', space=vmem, size = 0x12000, scoped, tag = 'internal scratch']
  %s0 = inlined_call_operand.vmem [shape: f32[2,8,128], index: 0, kind: input, shape index: {}]
  %s1 = inlined_call_operand.vmem [shape: f32[2,8,256], index: 1, kind: input, shape index: {}]
  %s2 = inlined_call_operand.vmem [shape: f32[2,8,128], index: 2, kind: input, shape index: {}]
  %s3 = inlined_call_operand.vmem [shape: f32[1,128], index: 3, kind: input, shape index: {}]
  %s4 = inlined_call_operand.vmem [shape: f32[1,128], index: 4, kind: input, shape index: {}]
  %s5 = inlined_call_operand.vmem [shape: f32[2,8,128], index: 5, kind: output, shape index: {0}]
  %s6 = inlined_call_operand.hbm [shape: f32[2,8,8], index: 6, kind: output, shape index: {1}]
  %7 = xla_tuple %s5, %s6
  %s8 = sld [smem:[#allocation0]]
  $region61: #{quaternion_transformer_block.4} parent=0
    _
  %s10 = ssub.s32 1, %s8
  %s11 = scalar_select 0, %s10, %s8
  $region1: #{quaternion_transformer_block.4} parent=0
    #allocation2 [shape = 'u8[8192]{0}', space=vmem, size = 0x2000, scoped, tag = 'output window, operand 1']
    #allocation3 [shape = 's32[2]{0}', space=sflag, size = 0x8, scoped, tag = 'scoped memory for quaternion_transformer_block.4']
    %12 = vsyncpa [#allocation3], 0
    %s13 = scalar_lea.sflag [#allocation3], 1
    %14 = vsyncpa %s13, 0
    loop: start=0, step=1, limit=4
    $region2: #{quaternion_transformer_block.4} parent=1 // loop_pre_header
      _
    $region3: #{quaternion_transformer_block.4} parent=1 // loop_header
      %s16 = sphi 0, %s20
      %p17 = scmp.ge.s32.totalorder %s16, 4
      %s23 = sphi 0, %s35
      %s24 = sphi 0, %s31
      %s25 = sphi 0, %s23
      %s26 = sphi 0, %s24
      %s27 = sphi 0, %s25
      %s28 = sphi 0, %s26
      %s40 = sphi 0, %s42
      %s43 = sphi 0, %s40
      %s44 = sphi 0, %s43
      %s60 = sphi 0, %s44
      %s66 = sphi 0, %s68
      %s69 = sphi 0, %s66
      %s70 = sphi 0, %s69
      %s86 = sphi 0, %s70
      %s94 = sphi 0, %s96
      %s97 = sphi 0, %s94
      %s98 = sphi 0, %s97
      %s114 = sphi 0, %s98
      %s118 = sphi 0, %s118
      %s120 = sphi 0, %s118
      %s121 = sphi 0, %s120
      %s135 = sphi 0, %s121
      %s139 = sphi 0, %s139
      %s141 = sphi 0, %s139
      %s142 = sphi 0, %s141
      %s156 = sphi 0, %s142
      %s164 = sphi 0, %s166
      %s167 = sphi 0, %s164
      %s168 = sphi 0, %s167
      %s184 = sphi 0, %s168
      %s192 = sphi 0, %s194
      %s195 = sphi 0, %s192
      %s196 = sphi 0, %s195
      %s212 = sphi 0, %s196
    $region4: #{quaternion_transformer_block.4} parent=1 // loop_header_branch
      %19 = sbr.rel (%p17) target = $region8
    $region5: #{quaternion_transformer_block.4} parent=1 // loop_body
      %s21 = ssub.s32 %s16, 1
      %s22 = ssub.s32 %s16, 2
      %s29 = sadd.s32 1, %s24
      %p30 = scmp.ge.s32.totalorder %s29, 1
      %s31 = scalar_select %p30, 0, %s29
      %s32 = sadd.s32 1, %s23
      %s33 = scalar_select %p30, %s32, %s23
      %p34 = scmp.ge.s32.totalorder %s33, 2
      %s35 = scalar_select %p34, 0, %s33
      %s36 = ssub.s32 %s23, %s35
      %s37 = ssub.s32 %s24, %s31
      %s38 = sor.u32 %s36, %s37
      %p39 = scmp.eq.s32.totalorder %s38, 0
      %s41 = sadd.s32 %s40, 1
      %s42 = scalar_select %p39, %s40, %s41
      %p45 = pneg %p39
      %p46 = scmp.eq.s32.totalorder %s16, 1
      %p47 = por %p45, %p46
      %p48 = scmp.ne.s32.totalorder %s40, %s43
      %p49 = scmp.eq.s32.totalorder %s16, 0
      %p50 = por %p48, %p49
      %p51 = scmp.ne.s32.totalorder %s40, %s43
      %p52 = scmp.eq.s32.totalorder %s21, 1
      %p53 = por %p51, %p52
      %p54 = scmp.ne.s32.totalorder %s43, %s44
      %p55 = scmp.eq.s32.totalorder %s21, 0
      %p56 = por %p54, %p55
      %p57 = scmp.ne.s32.totalorder %s43, %s44
      %p58 = scmp.eq.s32.totalorder %s22, 1
      %p59 = por %p57, %p58
      %p61 = scmp.ne.s32.totalorder %s44, %s60
      %p62 = scmp.eq.s32.totalorder %s22, 0
      %p63 = por %p61, %p62
      %s64 = ssub.s32 %s23, %s35
      %p65 = scmp.eq.s32.totalorder %s64, 0
      %s67 = sadd.s32 %s66, 1
      %s68 = scalar_select %p65, %s66, %s67
      %p71 = pneg %p65
      %p72 = scmp.eq.s32.totalorder %s16, 1
      %p73 = por %p71, %p72
      %p74 = scmp.ne.s32.totalorder %s66, %s69
      %p75 = scmp.eq.s32.totalorder %s16, 0
      %p76 = por %p74, %p75
      %p77 = scmp.ne.s32.totalorder %s66, %s69
      %p78 = scmp.eq.s32.totalorder %s21, 1
      %p79 = por %p77, %p78
      %p80 = scmp.ne.s32.totalorder %s69, %s70
      %p81 = scmp.eq.s32.totalorder %s21, 0
      %p82 = por %p80, %p81
      %p83 = scmp.ne.s32.totalorder %s69, %s70
      %p84 = scmp.eq.s32.totalorder %s22, 1
      %p85 = por %p83, %p84
      %p87 = scmp.ne.s32.totalorder %s70, %s86
      %p88 = scmp.eq.s32.totalorder %s22, 0
      %p89 = por %p87, %p88
      %s90 = ssub.s32 %s23, %s35
      %s91 = ssub.s32 %s24, %s31
      %s92 = sor.u32 %s90, %s91
      %p93 = scmp.eq.s32.totalorder %s92, 0
      %s95 = sadd.s32 %s94, 1
      %s96 = scalar_select %p93, %s94, %s95
      %p99 = pneg %p93
      %p100 = scmp.eq.s32.totalorder %s16, 1
      %p101 = por %p99, %p100
      %p102 = scmp.ne.s32.totalorder %s94, %s97
      %p103 = scmp.eq.s32.totalorder %s16, 0
      %p104 = por %p102, %p103
      %p105 = scmp.ne.s32.totalorder %s94, %s97
      %p106 = scmp.eq.s32.totalorder %s21, 1
      %p107 = por %p105, %p106
      %p108 = scmp.ne.s32.totalorder %s97, %s98
      %p109 = scmp.eq.s32.totalorder %s21, 0
      %p110 = por %p108, %p109
      %p111 = scmp.ne.s32.totalorder %s97, %s98
      %p112 = scmp.eq.s32.totalorder %s22, 1
      %p113 = por %p111, %p112
      %p115 = scmp.ne.s32.totalorder %s98, %s114
      %p116 = scmp.eq.s32.totalorder %s22, 0
      %p117 = por %p115, %p116
      %s119 = sadd.s32 %s118, 1
      %p122 = scmp.eq.s32.totalorder %s16, 1
      %p123 = scmp.ne.s32.totalorder %s118, %s120
      %p124 = scmp.eq.s32.totalorder %s16, 0
      %p125 = por %p123, %p124
      %p126 = scmp.ne.s32.totalorder %s118, %s120
      %p127 = scmp.eq.s32.totalorder %s21, 1
      %p128 = por %p126, %p127
      %p129 = scmp.ne.s32.totalorder %s120, %s121
      %p130 = scmp.eq.s32.totalorder %s21, 0
      %p131 = por %p129, %p130
      %p132 = scmp.ne.s32.totalorder %s120, %s121
      %p133 = scmp.eq.s32.totalorder %s22, 1
      %p134 = por %p132, %p133
      %p136 = scmp.ne.s32.totalorder %s121, %s135
      %p137 = scmp.eq.s32.totalorder %s22, 0
      %p138 = por %p136, %p137
      %s140 = sadd.s32 %s139, 1
      %p143 = scmp.eq.s32.totalorder %s16, 1
      %p144 = scmp.ne.s32.totalorder %s139, %s141
      %p145 = scmp.eq.s32.totalorder %s16, 0
      %p146 = por %p144, %p145
      %p147 = scmp.ne.s32.totalorder %s139, %s141
      %p148 = scmp.eq.s32.totalorder %s21, 1
      %p149 = por %p147, %p148
      %p150 = scmp.ne.s32.totalorder %s141, %s142
      %p151 = scmp.eq.s32.totalorder %s21, 0
      %p152 = por %p150, %p151
      %p153 = scmp.ne.s32.totalorder %s141, %s142
      %p154 = scmp.eq.s32.totalorder %s22, 1
      %p155 = por %p153, %p154
      %p157 = scmp.ne.s32.totalorder %s142, %s156
      %p158 = scmp.eq.s32.totalorder %s22, 0
      %p159 = por %p157, %p158
      %s160 = ssub.s32 %s23, %s35
      %s161 = ssub.s32 %s24, %s31
      %s162 = sor.u32 %s160, %s161
      %p163 = scmp.eq.s32.totalorder %s162, 0
      %s165 = sadd.s32 %s164, 1
      %s166 = scalar_select %p163, %s164, %s165
      %p169 = pneg %p163
      %p170 = scmp.eq.s32.totalorder %s16, 1
      %p171 = por %p169, %p170
      %p172 = scmp.ne.s32.totalorder %s164, %s167
      %p173 = scmp.eq.s32.totalorder %s16, 0
      %p174 = por %p172, %p173
      %p175 = scmp.ne.s32.totalorder %s164, %s167
      %p176 = scmp.eq.s32.totalorder %s21, 1
      %p177 = por %p175, %p176
      %p178 = scmp.ne.s32.totalorder %s167, %s168
      %p179 = scmp.eq.s32.totalorder %s21, 0
      %p180 = por %p178, %p179
      %p181 = scmp.ne.s32.totalorder %s167, %s168
      %p182 = scmp.eq.s32.totalorder %s22, 1
      %p183 = por %p181, %p182
      %p185 = scmp.ne.s32.totalorder %s168, %s184
      %p186 = scmp.eq.s32.totalorder %s22, 0
      %p187 = por %p185, %p186
      %s188 = ssub.s32 %s23, %s35
      %s189 = ssub.s32 %s24, %s31
      %s190 = sor.u32 %s188, %s189
      %p191 = scmp.eq.s32.totalorder %s190, 0
      %s193 = sadd.s32 %s192, 1
      %s194 = scalar_select %p191, %s192, %s193
      %p197 = pneg %p191
      %p198 = scmp.eq.s32.totalorder %s16, 1
      %p199 = por %p197, %p198
      %p200 = scmp.ne.s32.totalorder %s192, %s195
      %p201 = scmp.eq.s32.totalorder %s16, 0
      %p202 = por %p200, %p201
      %p203 = scmp.ne.s32.totalorder %s192, %s195
      %p204 = scmp.eq.s32.totalorder %s21, 1
      %p205 = por %p203, %p204
      %p206 = scmp.ne.s32.totalorder %s195, %s196
      %p207 = scmp.eq.s32.totalorder %s21, 0
      %p208 = por %p206, %p207
      %p209 = scmp.ne.s32.totalorder %s195, %s196
      %p210 = scmp.eq.s32.totalorder %s22, 1
      %p211 = por %p209, %p210
      %p213 = scmp.ne.s32.totalorder %s196, %s212
      %p214 = scmp.eq.s32.totalorder %s22, 0
      %p215 = por %p213, %p214
      %p216 = scmp.le.s32.totalorder 1, %s16
      %p217 = scmp.lt.s32.totalorder %s16, 3
      %p218 = pnand %p216, %p217
      %p219 = pneg %p218
      // Predicated region
      $region9: #{quaternion_transformer_block.4} parent=5 // pred_check
        _
      $region10: #{quaternion_transformer_block.4} parent=5 // pred_check_branch
        %221 = sbr.rel (%p218) target = $region12
      $region11: #{quaternion_transformer_block.4} parent=5 // pred_region
        %s222 = ssub.s32 %s16, 1
        // Predicated region
        $region13: #{quaternion_transformer_block.4} parent=11 // pred_check
          %p223 = pneg %p131
        $region14: #{quaternion_transformer_block.4} parent=11 // pred_check_branch
          %225 = sbr.rel (%p223) target = $region16
        $region15: #{quaternion_transformer_block.4} parent=11 // pred_region
          _
        $region16: #{quaternion_transformer_block.4} parent=11 // pred_fallthru
          _
        // Predicated region
        $region17: #{quaternion_transformer_block.4} parent=11 // pred_check
          %p226 = pneg %p152
        $region18: #{quaternion_transformer_block.4} parent=11 // pred_check_branch
          %228 = sbr.rel (%p226) target = $region20
        $region19: #{quaternion_transformer_block.4} parent=11 // pred_region
          _
        $region20: #{quaternion_transformer_block.4} parent=11 // pred_fallthru
          _
      $region12: #{quaternion_transformer_block.4} parent=5 // pred_fallthru
        _
      %p229 = scmp.lt.s32.totalorder %s16, 2
      // Predicated region
      $region21: #{quaternion_transformer_block.4} parent=5 // pred_check
        %p230 = pneg %p229
      $region22: #{quaternion_transformer_block.4} parent=5 // pred_check_branch
        %232 = sbr.rel (%p230) target = $region24
      $region23: #{quaternion_transformer_block.4} parent=5 // pred_region
        // Predicated region
        $region25: #{quaternion_transformer_block.4} parent=23 // pred_check
          %p233 = pneg %p50
        $region26: #{quaternion_transformer_block.4} parent=23 // pred_check_branch
          %235 = sbr.rel (%p233) target = $region28
        $region27: #{quaternion_transformer_block.4} parent=23 // pred_region
          %p236 = scmp.lt.s32.totalorder %s23, 1
          %s237 = scalar_select %p236, %s23, 1
          %p238 = scmp.lt.s32.totalorder %s24, 0
          %s239 = scalar_select %p238, %s24, 0
          %s240 = sadd.s32 %s239, %s237
          %s241 = smul.addr %s240, 8
          %s242 = scalar_lea.vmem %s0, %s241
        $region28: #{quaternion_transformer_block.4} parent=23 // pred_fallthru
          _
        // Predicated region
        $region29: #{quaternion_transformer_block.4} parent=23 // pred_check
          %p243 = pneg %p76
        $region30: #{quaternion_transformer_block.4} parent=23 // pred_check_branch
          %245 = sbr.rel (%p243) target = $region32
        $region31: #{quaternion_transformer_block.4} parent=23 // pred_region
          %p246 = scmp.lt.s32.totalorder %s23, 1
          %s247 = scalar_select %p246, %s23, 1
          %s248 = smul.addr %s247, 2
          %s249 = smul.addr %s248, 8
          %s250 = scalar_lea.vmem %s1, %s249
        $region32: #{quaternion_transformer_block.4} parent=23 // pred_fallthru
          _
        // Predicated region
        $region33: #{quaternion_transformer_block.4} parent=23 // pred_check
          %p251 = pneg %p104
        $region34: #{quaternion_transformer_block.4} parent=23 // pred_check_branch
          %253 = sbr.rel (%p251) target = $region36
        $region35: #{quaternion_transformer_block.4} parent=23 // pred_region
          %p254 = scmp.lt.s32.totalorder %s23, 1
          %s255 = scalar_select %p254, %s23, 1
          %p256 = scmp.lt.s32.totalorder %s24, 0
          %s257 = scalar_select %p256, %s24, 0
          %s258 = sadd.s32 %s257, %s255
          %s259 = smul.addr %s258, 8
          %s260 = scalar_lea.vmem %s2, %s259
        $region36: #{quaternion_transformer_block.4} parent=23 // pred_fallthru
          _
      $region24: #{quaternion_transformer_block.4} parent=5 // pred_fallthru
        _
      %p261 = scmp.le.s32.totalorder 1, %s16
      %p262 = scmp.lt.s32.totalorder %s16, 3
      %p263 = pnand %p261, %p262
      %p264 = pneg %p263
      // Predicated region
      $region37: #{quaternion_transformer_block.4} parent=5 // pred_check
        _
      $region38: #{quaternion_transformer_block.4} parent=5 // pred_check_branch
        %266 = sbr.rel (%p263) target = $region40
      $region39: #{quaternion_transformer_block.4} parent=5 // pred_region
        %s267 = ssub.s32 %s16, 1
        %p268 = scmp.lt.s32.totalorder %s25, 1
        %s269 = scalar_select %p268, %s25, 1
        %p270 = scmp.lt.s32.totalorder %s26, 0
        %s271 = scalar_select %p270, %s26, 0
        %s272 = sadd.s32 %s271, %s269
        %s273 = smul.addr %s272, 8
        %s274 = scalar_lea.vmem %s0, %s273
        %p275 = pneg %p56
        %p276 = pneg %p53
        %p277 = scmp.lt.s32.totalorder %s25, 1
        %s278 = scalar_select %p277, %s25, 1
        %s279 = smul.addr %s278, 2
        %s280 = smul.addr %s279, 8
        %s281 = scalar_lea.vmem %s1, %s280
        %p282 = pneg %p82
        %p283 = pneg %p79
        %p284 = scmp.lt.s32.totalorder %s25, 1
        %s285 = scalar_select %p284, %s25, 1
        %p286 = scmp.lt.s32.totalorder %s26, 0
        %s287 = scalar_select %p286, %s26, 0
        %s288 = sadd.s32 %s287, %s285
        %s289 = smul.addr %s288, 8
        %s290 = scalar_lea.vmem %s2, %s289
        %p291 = pneg %p110
        %p292 = pneg %p107
        %p293 = pneg %p131
        %p294 = pneg %p128
        %p295 = pneg %p152
        %p296 = pneg %p149
        %p297 = pneg %p180
        %p298 = pneg %p177
        %p299 = scmp.lt.s32.totalorder %s25, 1
        %s300 = scalar_select %p299, %s25, 1
        %p301 = scmp.lt.s32.totalorder %s26, 0
        %s302 = scalar_select %p301, %s26, 0
        %s303 = sadd.s32 %s302, %s300
        %s304 = smul.addr %s303, 8
        %s305 = scalar_lea.vmem %s5, %s304
        %p306 = pneg %p208
        %p307 = pneg %p205
        %s308 = sand.u32 %s195, 1
        %s309 = scalar_lea.sflag [#allocation3], %s308
        %s310 = sand.u32 %s195, 1
        %s311 = smul.addr %s310, 8
        %s312 = scalar_lea.vmem [#allocation2], %s311
        %p313 = scmp.lt.s32.totalorder %s25, 1
        %s314 = scalar_select %p313, %s25, 1
        %p315 = scmp.lt.s32.totalorder %s26, 0
        %s316 = scalar_select %p315, %s26, 0
        %s317 = sadd.s32 %s316, %s314
        %s318 = smul.addr %s317, 8
        %s319 = scalar_lea.vmem %s0, %s318
        %p320 = scmp.lt.s32.totalorder %s25, 1
        %s321 = scalar_select %p320, %s25, 1
        %s322 = smul.addr %s321, 2
        %s323 = smul.addr %s322, 8
        %s324 = scalar_lea.vmem %s1, %s323
        %p325 = scmp.lt.s32.totalorder %s25, 1
        %s326 = scalar_select %p325, %s25, 1
        %p327 = scmp.lt.s32.totalorder %s26, 0
        %s328 = scalar_select %p327, %s26, 0
        %s329 = sadd.s32 %s328, %s326
        %s330 = smul.addr %s329, 8
        %s331 = scalar_lea.vmem %s2, %s330
        %p332 = scmp.lt.s32.totalorder %s25, 1
        %s333 = scalar_select %p332, %s25, 1
        %p334 = scmp.lt.s32.totalorder %s26, 0
        %s335 = scalar_select %p334, %s26, 0
        %s336 = sadd.s32 %s335, %s333
        %s337 = smul.addr %s336, 8
        %s338 = scalar_lea.vmem %s5, %s337
        %v339 = vld [vmem:[%s319] sm:$0xff]
        %v340 = vld [vmem:[%s324] sm:$0xff]
        %v341 = vld [vmem:[%s324 + $0x8] sm:$0xff]
        %342 = vmatprep.subr.mxu0 0.0
        %343 = vmatpush1.xpose.msra.mxu0 %v340
        %344 = vmatprep.subr.mxu0 0.0
        %345 = vmatpush1.xpose.msra.mxu0 0.0
        %346 = vmatprep.subr.mxu0 0.0
        %347 = vmatpush1.xpose.msra.mxu0 0.0
        %348 = vmatprep.subr.mxu0 0.0
        %349 = vmatpush1.xpose.msra.mxu0 0.0
        %350 = vmatprep.subr.mxu0 0.0
        %351 = vmatpush1.xpose.msra.mxu0 0.0
        %352 = vmatprep.subr.mxu0 0.0
        %353 = vmatpush1.xpose.msra.mxu0 0.0
        %354 = vmatprep.subr.mxu0 0.0
        %355 = vmatpush1.xpose.msra.mxu0 0.0
        %356 = vmatprep.subr.mxu0 0.0
        %357 = vmatpush1.xpose.msra.mxu0 0.0
        %358 = vmatprep.subr.mxu0 0.0
        %359 = vmatpush1.xpose.msra.mxu0 0.0
        %360 = vmatprep.subr.mxu0 0.0
        %361 = vmatpush1.xpose.msra.mxu0 0.0
        %362 = vmatprep.subr.mxu0 0.0
        %363 = vmatpush1.xpose.msra.mxu0 0.0
        %364 = vmatprep.subr.mxu0 0.0
        %365 = vmatpush1.xpose.msra.mxu0 0.0
        %366 = vmatprep.subr.mxu0 0.0
        %367 = vmatpush1.xpose.msra.mxu0 0.0
        %368 = vmatprep.subr.mxu0 0.0
        %369 = vmatpush1.xpose.msra.mxu0 0.0
        %370 = vmatprep.subr.mxu0 0.0
        %371 = vmatpush1.xpose.msra.mxu0 0.0
        %372 = vmatprep.subr.mxu0 0.0
        %373 = vmatpush1.xpose.msra.mxu0 0.0
        %374 = vmatprep.subr.mxu0 0.0
        %375 = vmatpush1.xpose.msra.mxu0 0.0
        %376 = vmatprep.subr.mxu0 0.0
        %377 = vmatpush1.xpose.msra.mxu0 0.0
        %378 = vmatprep.subr.mxu0 0.0
        %379 = vmatpush1.xpose.msra.mxu0 0.0
        %380 = vmatprep.subr.mxu0 0.0
        %381 = vmatpush1.xpose.msra.mxu0 0.0
        %382 = vmatprep.subr.mxu0 0.0
        %383 = vmatpush1.xpose.msra.mxu0 0.0
        %384 = vmatprep.subr.mxu0 0.0
        %385 = vmatpush1.xpose.msra.mxu0 0.0
        %386 = vmatprep.subr.mxu0 0.0
        %387 = vmatpush1.xpose.msra.mxu0 0.0
        %388 = vmatprep.subr.mxu0 0.0
        %389 = vmatpush1.xpose.msra.mxu0 0.0
        %390 = vmatprep.subr.mxu0 0.0
        %391 = vmatpush1.xpose.msra.mxu0 0.0
        %392 = vmatprep.subr.mxu0 0.0
        %393 = vmatpush1.xpose.msra.mxu0 0.0
        %394 = vmatprep.subr.mxu0 0.0
        %395 = vmatpush1.xpose.msra.mxu0 0.0
        %396 = vmatprep.subr.mxu0 0.0
        %397 = vmatpush1.xpose.msra.mxu0 0.0
        %398 = vmatprep.subr.mxu0 0.0
        %399 = vmatpush1.xpose.msra.mxu0 0.0
        %400 = vmatprep.subr.mxu0 0.0
        %401 = vmatpush1.xpose.msra.mxu0 0.0
        %402 = vmatprep.subr.mxu0 0.0
        %403 = vmatpush1.xpose.msra.mxu0 0.0
        %404 = vmatprep.subr.mxu0 0.0
        %405 = vmatpush1.xpose.msra.mxu0 0.0
        %406 = vmatprep.mubr.f32.mxu0 0.0
        %407 = vmatmul.mubr.f32.gmra.mrb[0].mxu0 %v339
        %v408 = vpop.f32.mrb[0].mxu0
        %v409 = vadd.f32 0.0, %v408
        %v410 = vpop.f32.mrb[0].mxu0
        %411 = vdwg.mxu0
        %v412 = vmul.f32 %v409, 0.125
        %vm413 = vcmask 64512
        %v414 = vsel %vm413, %v412, -inf
        %415 = vmax.xlane.f32.xlu0 %v414
        %v416 = vpop.xlane.xlu0 %415
        %v417 = vsub.f32 %v412, %v416
        %v418 = vmul.f32 %v417, 1.442695
        %v419 = vpow.pop %v418
        %v420 = vsel %vm413, %v419, 0.0
        %421 = vadd.xlane.f32.xlu0 %v420
        %v422 = vpop.xlane.xlu0 %421
        %v423 = vrcp.pop %v422
        %v424 = vmul.f32 %v419, %v423
        %425 = vst.msk [vmem:[%s312] sm:$0xff] %vm413, %v424
        %v427 = vsel %vm413, %v424, 0
        %429 = vmatprep.subr.mxu0 0.0
        %430 = vmatpush1.msra.mxu0 %v341
        %431 = vmatprep.subr.mxu0 0.0
        %432 = vmatpush1.msra.mxu0 0.0
        %433 = vmatprep.subr.mxu0 0.0
        %434 = vmatpush1.msra.mxu0 0.0
        %435 = vmatprep.subr.mxu0 0.0
        %436 = vmatpush1.msra.mxu0 0.0
        %437 = vmatprep.subr.mxu0 0.0
        %438 = vmatpush1.msra.mxu0 0.0
        %439 = vmatprep.subr.mxu0 0.0
        %440 = vmatpush1.msra.mxu0 0.0
        %441 = vmatprep.subr.mxu0 0.0
        %442 = vmatpush1.msra.mxu0 0.0
        %443 = vmatprep.subr.mxu0 0.0
        %444 = vmatpush1.msra.mxu0 0.0
        %445 = vmatprep.subr.mxu0 0.0
        %446 = vmatpush1.msra.mxu0 0.0
        %447 = vmatprep.subr.mxu0 0.0
        %448 = vmatpush1.msra.mxu0 0.0
        %449 = vmatprep.subr.mxu0 0.0
        %450 = vmatpush1.msra.mxu0 0.0
        %451 = vmatprep.subr.mxu0 0.0
        %452 = vmatpush1.msra.mxu0 0.0
        %453 = vmatprep.subr.mxu0 0.0
        %454 = vmatpush1.msra.mxu0 0.0
        %455 = vmatprep.subr.mxu0 0.0
        %456 = vmatpush1.msra.mxu0 0.0
        %457 = vmatprep.subr.mxu0 0.0
        %458 = vmatpush1.msra.mxu0 0.0
        %459 = vmatprep.subr.mxu0 0.0
        %460 = vmatpush1.msra.mxu0 0.0
        %461 = vmatprep.subr.mxu0 0.0
        %462 = vmatpush1.msra.mxu0 0.0
        %463 = vmatprep.subr.mxu0 0.0
        %464 = vmatpush1.msra.mxu0 0.0
        %465 = vmatprep.subr.mxu0 0.0
        %466 = vmatpush1.msra.mxu0 0.0
        %467 = vmatprep.subr.mxu0 0.0
        %468 = vmatpush1.msra.mxu0 0.0
        %469 = vmatprep.subr.mxu0 0.0
        %470 = vmatpush1.msra.mxu0 0.0
        %471 = vmatprep.subr.mxu0 0.0
        %472 = vmatpush1.msra.mxu0 0.0
        %473 = vmatprep.subr.mxu0 0.0
        %474 = vmatpush1.msra.mxu0 0.0
        %475 = vmatprep.subr.mxu0 0.0
        %476 = vmatpush1.msra.mxu0 0.0
        %477 = vmatprep.subr.mxu0 0.0
        %478 = vmatpush1.msra.mxu0 0.0
        %479 = vmatprep.subr.mxu0 0.0
        %480 = vmatpush1.msra.mxu0 0.0
        %481 = vmatprep.subr.mxu0 0.0
        %482 = vmatpush1.msra.mxu0 0.0
        %483 = vmatprep.subr.mxu0 0.0
        %484 = vmatpush1.msra.mxu0 0.0
        %485 = vmatprep.subr.mxu0 0.0
        %486 = vmatpush1.msra.mxu0 0.0
        %487 = vmatprep.subr.mxu0 0.0
        %488 = vmatpush1.msra.mxu0 0.0
        %489 = vmatprep.subr.mxu0 0.0
        %490 = vmatpush1.msra.mxu0 0.0
        %491 = vmatprep.subr.mxu0 0.0
        %492 = vmatpush1.msra.mxu0 0.0
        %493 = vmatprep.mubr.f32.mxu0 0.0
        %494 = vmatmul.mubr.f32.gmra.mrb[0].mxu0 %v427
        %v495 = vpop.f32.mrb[0].mxu0
        %v496 = vadd.f32 0.0, %v495
        %v497 = vpop.f32.mrb[0].mxu0
        %498 = vdwg.mxu0
        %v499 = vld [vmem:[%s331] sm:$0xff]
        %v500 = vadd.f32 %v499, %v496
        %v501 = vmul.f32 %v500, %v500
        %503 = vrot.lane.b32.xlu0 %v501, 96
        %v504 = vpop.permute.xlu0 %503
        %v506 = vadd.f32 %v501, %v504
        %507 = vrot.lane.b32.xlu0 %v501, 64
        %v508 = vpop.permute.xlu0 %507
        %v510 = vadd.f32 %v506, %v508
        %511 = vrot.lane.b32.xlu0 %v501, 32
        %v512 = vpop.permute.xlu0 %511
        %v514 = vadd.f32 %v510, %v512
        %v515 = vadd.f32 %v514, 1e-06
        %v516 = vrsqrt.pop %v515
        %v517 = vmul.f32 %v515, %v516
        %vm518 = vcmp.eq.f32.partialorder %v515, inf
        %v519 = vsel %vm518, %v515, %v517
        %vm520 = vcmp.eq.f32.partialorder %v515, 0.0
        %v521 = vand.u32 %v515, 2147483648
        %v522 = vsel %vm520, %v521, %v519
        %v523 = vrcp.pop %v522
        %v524 = vmul.f32 1.0, %v523
        %v525 = vld [vmem:[%s3] sm:$0x1]
        %527 = vrot.lane.b32.xlu0 %v524, 32
        %v528 = vpop.permute.xlu0 %527
        %530 = vrot.lane.b32.xlu0 %v524, 64
        %v531 = vpop.permute.xlu0 %530
        %533 = vrot.lane.b32.xlu0 %v524, 96
        %v534 = vpop.permute.xlu0 %533
        %vm536 = vcmask 261120
        %v537 = vsel %vm536, %v524, %v528
        %vm538 = vcmask 523264
        %v539 = vsel %vm538, %v537, %v531
        %vm540 = vcmask 785408
        %v541 = vsel %vm540, %v539, %v534
        %v542 = vmul.f32 %v500, %v541
        %v544 = vlaneseq
        %v545 = vshrl.u32 %v544, 7
        %v546 = vsub.s32 0, %v545
        %v547 = vrot.slane %v525, %v546
        %v549 = vmul.f32 %v547, %v542
        %v550 = vld [vmem:[%s4] sm:$0x1]
        %v552 = vlaneseq
        %v553 = vshrl.u32 %v552, 7
        %v554 = vsub.s32 0, %v553
        %v555 = vrot.slane %v550, %v554
        %v557 = vadd.f32 %v549, %v555
        %558 = vst [vmem:[%s338] sm:$0xff] %v557
        %p559 = scmp.lt.s32.totalorder %s25, 1
        %s560 = scalar_select %p559, %s25, 1
        %p561 = scmp.lt.s32.totalorder %s26, 0
        %s562 = scalar_select %p561, %s26, 0
        %s563 = sadd.s32 %s562, %s560
        %s564 = smul.addr %s563, 8
        %s565 = scalar_lea.vmem %s5, %s564
        %s566 = sand.u32 %s195, 1
        %s567 = scalar_lea.sflag [#allocation3], %s566
        %s568 = sand.u32 %s195, 1
        %s569 = smul.addr %s568, 8
        %s570 = scalar_lea.vmem [#allocation2], %s569
        // Predicated region
        $region41: #{quaternion_transformer_block.4} parent=39 // pred_check
          %p571 = pneg %p177
        $region42: #{quaternion_transformer_block.4} parent=39 // pred_check_branch
          %573 = sbr.rel (%p571) target = $region44
        $region43: #{quaternion_transformer_block.4} parent=39 // pred_region
          _
        $region44: #{quaternion_transformer_block.4} parent=39 // pred_fallthru
          _
        // Predicated region
        $region45: #{quaternion_transformer_block.4} parent=39 // pred_check
          %p574 = pneg %p205
        $region46: #{quaternion_transformer_block.4} parent=39 // pred_check_branch
          %576 = sbr.rel (%p574) target = $region48
        $region47: #{quaternion_transformer_block.4} parent=39 // pred_region
          %s578 = ssub.s32 128, 128
          %579 = vsyncadd %s567, %s578
          %s580 = sadd.s32 %s26, %s25
          %s581 = smul.addr %s580, 128
          %s582 = scalar_lea.hbm %s6, %s581
          %s584 = sshll.u32 %s570, 4
          %s585 = int_to_ptr.vmem [resolvable:$true] %s584
          %587 = dma.vmem_to_hbm [thread:$0]  %s585, 128, %s582, %s567
        $region48: #{quaternion_transformer_block.4} parent=39 // pred_fallthru
          _
      $region40: #{quaternion_transformer_block.4} parent=5 // pred_fallthru
        _
      %p588 = scmp.le.s32.totalorder 2, %s16
      // Predicated region
      $region49: #{quaternion_transformer_block.4} parent=5 // pred_check
        %p589 = pneg %p588
      $region50: #{quaternion_transformer_block.4} parent=5 // pred_check_branch
        %591 = sbr.rel (%p589) target = $region52
      $region51: #{quaternion_transformer_block.4} parent=5 // pred_region
        %s592 = ssub.s32 %s16, 2
        // Predicated region
        $region53: #{quaternion_transformer_block.4} parent=51 // pred_check
          %p593 = pneg %p183
        $region54: #{quaternion_transformer_block.4} parent=51 // pred_check_branch
          %595 = sbr.rel (%p593) target = $region56
        $region55: #{quaternion_transformer_block.4} parent=51 // pred_region
          %p596 = scmp.lt.s32.totalorder %s27, 1
          %s597 = scalar_select %p596, %s27, 1
          %p598 = scmp.lt.s32.totalorder %s28, 0
          %s599 = scalar_select %p598, %s28, 0
          %s600 = sadd.s32 %s599, %s597
          %s601 = smul.addr %s600, 8
          %s602 = scalar_lea.vmem %s5, %s601
        $region56: #{quaternion_transformer_block.4} parent=51 // pred_fallthru
          _
        // Predicated region
        $region57: #{quaternion_transformer_block.4} parent=51 // pred_check
          %p603 = pneg %p211
        $region58: #{quaternion_transformer_block.4} parent=51 // pred_check_branch
          %605 = sbr.rel (%p603) target = $region60
        $region59: #{quaternion_transformer_block.4} parent=51 // pred_region
          %s606 = sand.u32 %s196, 1
          %s607 = scalar_lea.sflag [#allocation3], %s606
          %s608 = sand.u32 %s196, 1
          %s609 = smul.addr %s608, 8
          %s610 = scalar_lea.vmem [#allocation2], %s609
          %611 = dma.done %s607, 128
        $region60: #{quaternion_transformer_block.4} parent=51 // pred_fallthru
          _
      $region52: #{quaternion_transformer_block.4} parent=5 // pred_fallthru
        _
    $region6: #{quaternion_transformer_block.4} parent=1 // loop_footer
      %s20 = sadd.s32 1, %s16
    $region7: #{quaternion_transformer_block.4} parent=1 // loop_footer_branch
      %15 = sbr.rel target = $region3
    $region8: #{quaternion_transformer_block.4} parent=1 // loop_exit
      _
    %612 = vsyncpa [#allocation3], 1
    %s613 = scalar_lea.sflag [#allocation3], 1
    %614 = vsyncpa %s613, 1

// kernel: quaternion_transformer_block.5
$region0: #{quaternion_transformer_block.5}
  #allocation0 [shape = 'u32[]', space=smem, size = 0x4, offset = 0x4, fixed_abs, tag = 'smem constant byte address 0x4 - core index']
  #allocation1 [shape = 'u32[144,128]{1,0:T(1,128)}', space=vmem, size = 0x12000, scoped, tag = 'internal scratch']
  %s0 = inlined_call_operand.vmem [shape: f32[16,128], index: 0, kind: input, shape index: {}]
  %s1 = inlined_call_operand.vmem [shape: f32[128,128], index: 1, kind: input, shape index: {}]
  %s2 = inlined_call_operand.vmem [shape: f32[1,128], index: 2, kind: input, shape index: {}]
  %s3 = inlined_call_operand.vmem [shape: f32[1,32], index: 3, kind: input, shape index: {}]
  %s4 = inlined_call_operand.vmem [shape: f32[128,128], index: 4, kind: input, shape index: {}]
  %s5 = inlined_call_operand.vmem [shape: f32[1,128], index: 5, kind: input, shape index: {}]
  %s6 = inlined_call_operand.vmem [shape: f32[1,128], index: 6, kind: input, shape index: {}]
  %s7 = inlined_call_operand.vmem [shape: f32[1,128], index: 7, kind: input, shape index: {}]
  %s8 = inlined_call_operand.vmem [shape: f32[128,64], index: 8, kind: input, shape index: {}]
  %s9 = inlined_call_operand.vmem [shape: f32[16,64], index: 9, kind: output, shape index: {}]
  %s10 = sld [smem:[#allocation0]]
  $region46: #{quaternion_transformer_block.5} parent=0
    _
  %s12 = ssub.s32 1, %s10
  %s13 = scalar_select 0, %s12, %s10
  // Predicated region
  $region2: #{quaternion_transformer_block.5} parent=0 // pred_check
    _
  $region3: #{quaternion_transformer_block.5} parent=0 // pred_check_branch
    %15 = sbr.rel (0) target = $region5
  $region4: #{quaternion_transformer_block.5} parent=0 // pred_region
    _
  $region5: #{quaternion_transformer_block.5} parent=0 // pred_fallthru
    _
  // Predicated region
  $region6: #{quaternion_transformer_block.5} parent=0 // pred_check
    _
  $region7: #{quaternion_transformer_block.5} parent=0 // pred_check_branch
    %17 = sbr.rel (0) target = $region9
  $region8: #{quaternion_transformer_block.5} parent=0 // pred_region
    _
  $region9: #{quaternion_transformer_block.5} parent=0 // pred_fallthru
    _
  // Predicated region
  $region10: #{quaternion_transformer_block.5} parent=0 // pred_check
    _
  $region11: #{quaternion_transformer_block.5} parent=0 // pred_check_branch
    %19 = sbr.rel (0) target = $region13
  $region12: #{quaternion_transformer_block.5} parent=0 // pred_region
    _
  $region13: #{quaternion_transformer_block.5} parent=0 // pred_fallthru
    _
  // Predicated region
  $region14: #{quaternion_transformer_block.5} parent=0 // pred_check
    _
  $region15: #{quaternion_transformer_block.5} parent=0 // pred_check_branch
    %21 = sbr.rel (0) target = $region17
  $region16: #{quaternion_transformer_block.5} parent=0 // pred_region
    _
  $region17: #{quaternion_transformer_block.5} parent=0 // pred_fallthru
    _
  // Predicated region
  $region18: #{quaternion_transformer_block.5} parent=0 // pred_check
    _
  $region19: #{quaternion_transformer_block.5} parent=0 // pred_check_branch
    %23 = sbr.rel (0) target = $region21
  $region20: #{quaternion_transformer_block.5} parent=0 // pred_region
    _
  $region21: #{quaternion_transformer_block.5} parent=0 // pred_fallthru
    _
  // Predicated region
  $region22: #{quaternion_transformer_block.5} parent=0 // pred_check
    _
  $region23: #{quaternion_transformer_block.5} parent=0 // pred_check_branch
    %25 = sbr.rel (0) target = $region25
  $region24: #{quaternion_transformer_block.5} parent=0 // pred_region
    _
  $region25: #{quaternion_transformer_block.5} parent=0 // pred_fallthru
    _
  // Predicated region
  $region26: #{quaternion_transformer_block.5} parent=0 // pred_check
    _
  $region27: #{quaternion_transformer_block.5} parent=0 // pred_check_branch
    %27 = sbr.rel (0) target = $region29
  $region28: #{quaternion_transformer_block.5} parent=0 // pred_region
    _
  $region29: #{quaternion_transformer_block.5} parent=0 // pred_fallthru
    _
  // Predicated region
  $region30: #{quaternion_transformer_block.5} parent=0 // pred_check
    _
  $region31: #{quaternion_transformer_block.5} parent=0 // pred_check_branch
    %29 = sbr.rel (0) target = $region33
  $region32: #{quaternion_transformer_block.5} parent=0 // pred_region
    _
  $region33: #{quaternion_transformer_block.5} parent=0 // pred_fallthru
    _
  // Predicated region
  $region34: #{quaternion_transformer_block.5} parent=0 // pred_check
    _
  $region35: #{quaternion_transformer_block.5} parent=0 // pred_check_branch
    %31 = sbr.rel (0) target = $region37
  $region36: #{quaternion_transformer_block.5} parent=0 // pred_region
    _
  $region37: #{quaternion_transformer_block.5} parent=0 // pred_fallthru
    _
  %v32 = vld [vmem:[%s0] sm:$0xff]
  %v33 = vld [vmem:[%s0 + $0x8] sm:$0xff]
  %v34 = vld [vmem:[%s1] sm:$0xff]
  %v35 = vld [vmem:[%s1 + $0x8] sm:$0xff]
  %v36 = vld [vmem:[%s1 + $0x10] sm:$0xff]
  %v37 = vld [vmem:[%s1 + $0x18] sm:$0xff]
  %v38 = vld [vmem:[%s1 + $0x20] sm:$0xff]
  %v39 = vld [vmem:[%s1 + $0x28] sm:$0xff]
  %v40 = vld [vmem:[%s1 + $0x30] sm:$0xff]
  %v41 = vld [vmem:[%s1 + $0x38] sm:$0xff]
  %v42 = vld [vmem:[%s1 + $0x40] sm:$0xff]
  %v43 = vld [vmem:[%s1 + $0x48] sm:$0xff]
  %v44 = vld [vmem:[%s1 + $0x50] sm:$0xff]
  %v45 = vld [vmem:[%s1 + $0x58] sm:$0xff]
  %v46 = vld [vmem:[%s1 + $0x60] sm:$0xff]
  %v47 = vld [vmem:[%s1 + $0x68] sm:$0xff]
  %v48 = vld [vmem:[%s1 + $0x70] sm:$0xff]
  %v49 = vld [vmem:[%s1 + $0x78] sm:$0xff]
  %v50 = vld [vmem:[%s2] sm:$0x1]
  %v52 = vlaneseq
  %v53 = vshrl.u32 %v52, 7
  %v54 = vsub.s32 0, %v53
  %v55 = vrot.slane %v50, %v54
  %57 = vmatprep.subr.mxu0 0.0
  %58 = vmatpush1.msra.mxu0 %v34
  %59 = vmatprep.subr.mxu0 0.0
  %60 = vmatpush1.msra.mxu0 %v35
  %61 = vmatprep.subr.mxu0 0.0
  %62 = vmatpush1.msra.mxu0 %v36
  %63 = vmatprep.subr.mxu0 0.0
  %64 = vmatpush1.msra.mxu0 %v37
  %65 = vmatprep.subr.mxu0 0.0
  %66 = vmatpush1.msra.mxu0 %v38
  %67 = vmatprep.subr.mxu0 0.0
  %68 = vmatpush1.msra.mxu0 %v39
  %69 = vmatprep.subr.mxu0 0.0
  %70 = vmatpush1.msra.mxu0 %v40
  %71 = vmatprep.subr.mxu0 0.0
  %72 = vmatpush1.msra.mxu0 %v41
  %73 = vmatprep.subr.mxu0 0.0
  %74 = vmatpush1.msra.mxu0 %v42
  %75 = vmatprep.subr.mxu0 0.0
  %76 = vmatpush1.msra.mxu0 %v43
  %77 = vmatprep.subr.mxu0 0.0
  %78 = vmatpush1.msra.mxu0 %v44
  %79 = vmatprep.subr.mxu0 0.0
  %80 = vmatpush1.msra.mxu0 %v45
  %81 = vmatprep.subr.mxu0 0.0
  %82 = vmatpush1.msra.mxu0 %v46
  %83 = vmatprep.subr.mxu0 0.0
  %84 = vmatpush1.msra.mxu0 %v47
  %85 = vmatprep.subr.mxu0 0.0
  %86 = vmatpush1.msra.mxu0 %v48
  %87 = vmatprep.subr.mxu0 0.0
  %88 = vmatpush1.msra.mxu0 %v49
  %89 = vmatprep.subr.mxu0 0.0
  %90 = vmatpush1.msra.mxu0 0.0
  %91 = vmatprep.subr.mxu0 0.0
  %92 = vmatpush1.msra.mxu0 0.0
  %93 = vmatprep.subr.mxu0 0.0
  %94 = vmatpush1.msra.mxu0 0.0
  %95 = vmatprep.subr.mxu0 0.0
  %96 = vmatpush1.msra.mxu0 0.0
  %97 = vmatprep.subr.mxu0 0.0
  %98 = vmatpush1.msra.mxu0 0.0
  %99 = vmatprep.subr.mxu0 0.0
  %100 = vmatpush1.msra.mxu0 0.0
  %101 = vmatprep.subr.mxu0 0.0
  %102 = vmatpush1.msra.mxu0 0.0
  %103 = vmatprep.subr.mxu0 0.0
  %104 = vmatpush1.msra.mxu0 0.0
  %105 = vmatprep.subr.mxu0 0.0
  %106 = vmatpush1.msra.mxu0 0.0
  %107 = vmatprep.subr.mxu0 0.0
  %108 = vmatpush1.msra.mxu0 0.0
  %109 = vmatprep.subr.mxu0 0.0
  %110 = vmatpush1.msra.mxu0 0.0
  %111 = vmatprep.subr.mxu0 0.0
  %112 = vmatpush1.msra.mxu0 0.0
  %113 = vmatprep.subr.mxu0 0.0
  %114 = vmatpush1.msra.mxu0 0.0
  %115 = vmatprep.subr.mxu0 0.0
  %116 = vmatpush1.msra.mxu0 0.0
  %117 = vmatprep.subr.mxu0 0.0
  %118 = vmatpush1.msra.mxu0 0.0
  %119 = vmatprep.subr.mxu0 0.0
  %120 = vmatpush1.msra.mxu0 0.0
  %121 = vmatprep.mubr.f32.mxu0 0.0
  %122 = vmatmul.mubr.f32.gmra.mrb[0].mxu0 %v32
  %v123 = vpop.f32.mrb[0].mxu0
  %v124 = vadd.f32 %v55, %v123
  %v125 = vpop.f32.mrb[0].mxu0
  %126 = vmatprep.mubr.f32.mxu0 0.0
  %127 = vmatmul.mubr.f32.gmra.mrb[0].mxu0 %v33
  %v128 = vpop.f32.mrb[0].mxu0
  %v129 = vadd.f32 %v55, %v128
  %v130 = vpop.f32.mrb[0].mxu0
  %131 = vdwg.mxu0
  %v132 = vmul.f32 %v124, %v124
  %v133 = vmul.f32 %v129, %v129
  %136 = vrot.lane.b32.xlu0 %v132, 96
  %v137 = vpop.permute.xlu0 %136
  %138 = vrot.lane.b32.xlu0 %v133, 96
  %v139 = vpop.permute.xlu0 %138
  %v142 = vadd.f32 %v132, %v137
  %v143 = vadd.f32 %v133, %v139
  %144 = vrot.lane.b32.xlu0 %v132, 64
  %v145 = vpop.permute.xlu0 %144
  %146 = vrot.lane.b32.xlu0 %v133, 64
  %v147 = vpop.permute.xlu0 %146
  %v150 = vadd.f32 %v142, %v145
  %v151 = vadd.f32 %v143, %v147
  %152 = vrot.lane.b32.xlu0 %v132, 32
  %v153 = vpop.permute.xlu0 %152
  %154 = vrot.lane.b32.xlu0 %v133, 32
  %v155 = vpop.permute.xlu0 %154
  %v158 = vadd.f32 %v150, %v153
  %v159 = vadd.f32 %v151, %v155
  %v160 = vrsqrt.pop %v158
  %v161 = vmul.f32 %v158, %v160
  %vm162 = vcmp.eq.f32.partialorder %v158, inf
  %v163 = vsel %vm162, %v158, %v161
  %vm164 = vcmp.eq.f32.partialorder %v158, 0.0
  %v165 = vand.u32 %v158, 2147483648
  %v166 = vsel %vm164, %v165, %v163
  %v167 = vrsqrt.pop %v159
  %v168 = vmul.f32 %v159, %v167
  %vm169 = vcmp.eq.f32.partialorder %v159, inf
  %v170 = vsel %vm169, %v159, %v168
  %vm171 = vcmp.eq.f32.partialorder %v159, 0.0
  %v172 = vand.u32 %v159, 2147483648
  %v173 = vsel %vm171, %v172, %v170
  %v174 = vld [vmem:[%s3] sm:$0x1]
  %v176 = vlaneseq
  %v177 = vshrl.u32 %v176, 7
  %v178 = vsub.s32 0, %v177
  %v179 = vrot.slane %v174, %v178
  %v181 = vadd.f32 %v166, %v179
  %v182 = vadd.f32 %v173, %v179
  %v183 = vmax.f32 %v181, 0.0
  %v184 = vmax.f32 %v182, 0.0
  %v185 = vadd.f32 %v166, 1e-06
  %v186 = vadd.f32 %v173, 1e-06
  %v187 = vrcp.pop %v185
  %v188 = vmul.f32 %v183, %v187
  %v189 = vrcp.pop %v186
  %v190 = vmul.f32 %v184, %v189
  %193 = vrot.lane.b32.xlu0 %v188, 32
  %v194 = vpop.permute.xlu0 %193
  %195 = vrot.lane.b32.xlu0 %v190, 32
  %v196 = vpop.permute.xlu0 %195
  %199 = vrot.lane.b32.xlu0 %v188, 64
  %v200 = vpop.permute.xlu0 %199
  %201 = vrot.lane.b32.xlu0 %v190, 64
  %v202 = vpop.permute.xlu0 %201
  %205 = vrot.lane.b32.xlu0 %v188, 96
  %v206 = vpop.permute.xlu0 %205
  %207 = vrot.lane.b32.xlu0 %v190, 96
  %v208 = vpop.permute.xlu0 %207
  %vm211 = vcmask 261120
  %v212 = vsel %vm211, %v188, %v194
  %v213 = vsel %vm211, %v190, %v196
  %vm214 = vcmask 523264
  %v215 = vsel %vm214, %v212, %v200
  %v216 = vsel %vm214, %v213, %v202
  %vm217 = vcmask 785408
  %v218 = vsel %vm217, %v215, %v206
  %v219 = vsel %vm217, %v216, %v208
  %v220 = vmul.f32 %v124, %v218
  %v221 = vmul.f32 %v129, %v219
  %v222 = vld [vmem:[%s4] sm:$0xff]
  %v223 = vld [vmem:[%s4 + $0x8] sm:$0xff]
  %v224 = vld [vmem:[%s4 + $0x10] sm:$0xff]
  %v225 = vld [vmem:[%s4 + $0x18] sm:$0xff]
  %v226 = vld [vmem:[%s4 + $0x20] sm:$0xff]
  %v227 = vld [vmem:[%s4 + $0x28] sm:$0xff]
  %v228 = vld [vmem:[%s4 + $0x30] sm:$0xff]
  %v229 = vld [vmem:[%s4 + $0x38] sm:$0xff]
  %v230 = vld [vmem:[%s4 + $0x40] sm:$0xff]
  %v231 = vld [vmem:[%s4 + $0x48] sm:$0xff]
  %v232 = vld [vmem:[%s4 + $0x50] sm:$0xff]
  %v233 = vld [vmem:[%s4 + $0x58] sm:$0xff]
  %v234 = vld [vmem:[%s4 + $0x60] sm:$0xff]
  %v235 = vld [vmem:[%s4 + $0x68] sm:$0xff]
  %v236 = vld [vmem:[%s4 + $0x70] sm:$0xff]
  %v237 = vld [vmem:[%s4 + $0x78] sm:$0xff]
  %v238 = vld [vmem:[%s5] sm:$0x1]
  %v240 = vlaneseq
  %v241 = vshrl.u32 %v240, 7
  %v242 = vsub.s32 0, %v241
  %v243 = vrot.slane %v238, %v242
  %245 = vmatprep.subr.mxu0 0.0
  %246 = vmatpush1.msra.mxu0 %v222
  %247 = vmatprep.subr.mxu0 0.0
  %248 = vmatpush1.msra.mxu0 %v223
  %249 = vmatprep.subr.mxu0 0.0
  %250 = vmatpush1.msra.mxu0 %v224
  %251 = vmatprep.subr.mxu0 0.0
  %252 = vmatpush1.msra.mxu0 %v225
  %253 = vmatprep.subr.mxu0 0.0
  %254 = vmatpush1.msra.mxu0 %v226
  %255 = vmatprep.subr.mxu0 0.0
  %256 = vmatpush1.msra.mxu0 %v227
  %257 = vmatprep.subr.mxu0 0.0
  %258 = vmatpush1.msra.mxu0 %v228
  %259 = vmatprep.subr.mxu0 0.0
  %260 = vmatpush1.msra.mxu0 %v229
  %261 = vmatprep.subr.mxu0 0.0
  %262 = vmatpush1.msra.mxu0 %v230
  %263 = vmatprep.subr.mxu0 0.0
  %264 = vmatpush1.msra.mxu0 %v231
  %265 = vmatprep.subr.mxu0 0.0
  %266 = vmatpush1.msra.mxu0 %v232
  %267 = vmatprep.subr.mxu0 0.0
  %268 = vmatpush1.msra.mxu0 %v233
  %269 = vmatprep.subr.mxu0 0.0
  %270 = vmatpush1.msra.mxu0 %v234
  %271 = vmatprep.subr.mxu0 0.0
  %272 = vmatpush1.msra.mxu0 %v235
  %273 = vmatprep.subr.mxu0 0.0
  %274 = vmatpush1.msra.mxu0 %v236
  %275 = vmatprep.subr.mxu0 0.0
  %276 = vmatpush1.msra.mxu0 %v237
  %277 = vmatprep.subr.mxu0 0.0
  %278 = vmatpush1.msra.mxu0 0.0
  %279 = vmatprep.subr.mxu0 0.0
  %280 = vmatpush1.msra.mxu0 0.0
  %281 = vmatprep.subr.mxu0 0.0
  %282 = vmatpush1.msra.mxu0 0.0
  %283 = vmatprep.subr.mxu0 0.0
  %284 = vmatpush1.msra.mxu0 0.0
  %285 = vmatprep.subr.mxu0 0.0
  %286 = vmatpush1.msra.mxu0 0.0
  %287 = vmatprep.subr.mxu0 0.0
  %288 = vmatpush1.msra.mxu0 0.0
  %289 = vmatprep.subr.mxu0 0.0
  %290 = vmatpush1.msra.mxu0 0.0
  %291 = vmatprep.subr.mxu0 0.0
  %292 = vmatpush1.msra.mxu0 0.0
  %293 = vmatprep.subr.mxu0 0.0
  %294 = vmatpush1.msra.mxu0 0.0
  %295 = vmatprep.subr.mxu0 0.0
  %296 = vmatpush1.msra.mxu0 0.0
  %297 = vmatprep.subr.mxu0 0.0
  %298 = vmatpush1.msra.mxu0 0.0
  %299 = vmatprep.subr.mxu0 0.0
  %300 = vmatpush1.msra.mxu0 0.0
  %301 = vmatprep.subr.mxu0 0.0
  %302 = vmatpush1.msra.mxu0 0.0
  %303 = vmatprep.subr.mxu0 0.0
  %304 = vmatpush1.msra.mxu0 0.0
  %305 = vmatprep.subr.mxu0 0.0
  %306 = vmatpush1.msra.mxu0 0.0
  %307 = vmatprep.subr.mxu0 0.0
  %308 = vmatpush1.msra.mxu0 0.0
  %309 = vmatprep.mubr.f32.mxu0 0.0
  %310 = vmatmul.mubr.f32.gmra.mrb[0].mxu0 %v220
  %v311 = vpop.f32.mrb[0].mxu0
  %v312 = vadd.f32 %v243, %v311
  %v313 = vpop.f32.mrb[0].mxu0
  %314 = vmatprep.mubr.f32.mxu0 0.0
  %315 = vmatmul.mubr.f32.gmra.mrb[0].mxu0 %v221
  %v316 = vpop.f32.mrb[0].mxu0
  %v317 = vadd.f32 %v243, %v316
  %v318 = vpop.f32.mrb[0].mxu0
  %319 = vdwg.mxu0
  %v320 = vadd.f32 %v32, %v312
  %v321 = vadd.f32 %v33, %v317
  %v322 = vmul.f32 %v320, %v320
  %v323 = vmul.f32 %v321, %v321
  %326 = vrot.lane.b32.xlu0 %v322, 96
  %v327 = vpop.permute.xlu0 %326
  %328 = vrot.lane.b32.xlu0 %v323, 96
  %v329 = vpop.permute.xlu0 %328
  %v332 = vadd.f32 %v322, %v327
  %v333 = vadd.f32 %v323, %v329
  %334 = vrot.lane.b32.xlu0 %v322, 64
  %v335 = vpop.permute.xlu0 %334
  %336 = vrot.lane.b32.xlu0 %v323, 64
  %v337 = vpop.permute.xlu0 %336
  %v340 = vadd.f32 %v332, %v335
  %v341 = vadd.f32 %v333, %v337
  %342 = vrot.lane.b32.xlu0 %v322, 32
  %v343 = vpop.permute.xlu0 %342
  %344 = vrot.lane.b32.xlu0 %v323, 32
  %v345 = vpop.permute.xlu0 %344
  %v348 = vadd.f32 %v340, %v343
  %v349 = vadd.f32 %v341, %v345
  %v350 = vadd.f32 %v348, 1e-06
  %v351 = vadd.f32 %v349, 1e-06
  %v352 = vrsqrt.pop %v350
  %v353 = vmul.f32 %v350, %v352
  %vm354 = vcmp.eq.f32.partialorder %v350, inf
  %v355 = vsel %vm354, %v350, %v353
  %vm356 = vcmp.eq.f32.partialorder %v350, 0.0
  %v357 = vand.u32 %v350, 2147483648
  %v358 = vsel %vm356, %v357, %v355
  %v359 = vrsqrt.pop %v351
  %v360 = vmul.f32 %v351, %v359
  %vm361 = vcmp.eq.f32.partialorder %v351, inf
  %v362 = vsel %vm361, %v351, %v360
  %vm363 = vcmp.eq.f32.partialorder %v351, 0.0
  %v364 = vand.u32 %v351, 2147483648
  %v365 = vsel %vm363, %v364, %v362
  %v366 = vrcp.pop %v358
  %v367 = vmul.f32 1.0, %v366
  %v368 = vrcp.pop %v365
  %v369 = vmul.f32 1.0, %v368
  %v370 = vld [vmem:[%s6] sm:$0x1]
  %373 = vrot.lane.b32.xlu0 %v367, 32
  %v374 = vpop.permute.xlu0 %373
  %375 = vrot.lane.b32.xlu0 %v369, 32
  %v376 = vpop.permute.xlu0 %375
  %379 = vrot.lane.b32.xlu0 %v367, 64
  %v380 = vpop.permute.xlu0 %379
  %381 = vrot.lane.b32.xlu0 %v369, 64
  %v382 = vpop.permute.xlu0 %381
  %385 = vrot.lane.b32.xlu0 %v367, 96
  %v386 = vpop.permute.xlu0 %385
  %387 = vrot.lane.b32.xlu0 %v369, 96
  %v388 = vpop.permute.xlu0 %387
  %v391 = vsel %vm211, %v367, %v374
  %v392 = vsel %vm211, %v369, %v376
  %v393 = vsel %vm214, %v391, %v380
  %v394 = vsel %vm214, %v392, %v382
  %v395 = vsel %vm217, %v393, %v386
  %v396 = vsel %vm217, %v394, %v388
  %v397 = vmul.f32 %v320, %v395
  %v398 = vmul.f32 %v321, %v396
  %v400 = vlaneseq
  %v401 = vshrl.u32 %v400, 7
  %v402 = vsub.s32 0, %v401
  %v403 = vrot.slane %v370, %v402
  %v405 = vmul.f32 %v403, %v397
  %v406 = vmul.f32 %v403, %v398
  %v407 = vld [vmem:[%s7] sm:$0x1]
  %v409 = vlaneseq
  %v410 = vshrl.u32 %v409, 7
  %v411 = vsub.s32 0, %v410
  %v412 = vrot.slane %v407, %v411
  %v414 = vadd.f32 %v405, %v412
  %v415 = vadd.f32 %v406, %v412
  %v416 = vld [vmem:[%s8] sm:$0xff]
  %v417 = vld [vmem:[%s8 + $0x8] sm:$0xff]
  %v418 = vld [vmem:[%s8 + $0x10] sm:$0xff]
  %v419 = vld [vmem:[%s8 + $0x18] sm:$0xff]
  %v420 = vld [vmem:[%s8 + $0x20] sm:$0xff]
  %v421 = vld [vmem:[%s8 + $0x28] sm:$0xff]
  %v422 = vld [vmem:[%s8 + $0x30] sm:$0xff]
  %v423 = vld [vmem:[%s8 + $0x38] sm:$0xff]
  %v424 = vld [vmem:[%s8 + $0x40] sm:$0xff]
  %v425 = vld [vmem:[%s8 + $0x48] sm:$0xff]
  %v426 = vld [vmem:[%s8 + $0x50] sm:$0xff]
  %v427 = vld [vmem:[%s8 + $0x58] sm:$0xff]
  %v428 = vld [vmem:[%s8 + $0x60] sm:$0xff]
  %v429 = vld [vmem:[%s8 + $0x68] sm:$0xff]
  %v430 = vld [vmem:[%s8 + $0x70] sm:$0xff]
  %v431 = vld [vmem:[%s8 + $0x78] sm:$0xff]
  %432 = vmatprep.subr.mxu0 0.0
  %433 = vmatpush1.msra.mxu0 %v416
  %434 = vmatprep.subr.mxu0 0.0
  %435 = vmatpush1.msra.mxu0 %v417
  %436 = vmatprep.subr.mxu0 0.0
  %437 = vmatpush1.msra.mxu0 %v418
  %438 = vmatprep.subr.mxu0 0.0
  %439 = vmatpush1.msra.mxu0 %v419
  %440 = vmatprep.subr.mxu0 0.0
  %441 = vmatpush1.msra.mxu0 %v420
  %442 = vmatprep.subr.mxu0 0.0
  %443 = vmatpush1.msra.mxu0 %v421
  %444 = vmatprep.subr.mxu0 0.0
  %445 = vmatpush1.msra.mxu0 %v422
  %446 = vmatprep.subr.mxu0 0.0
  %447 = vmatpush1.msra.mxu0 %v423
  %448 = vmatprep.subr.mxu0 0.0
  %449 = vmatpush1.msra.mxu0 %v424
  %450 = vmatprep.subr.mxu0 0.0
  %451 = vmatpush1.msra.mxu0 %v425
  %452 = vmatprep.subr.mxu0 0.0
  %453 = vmatpush1.msra.mxu0 %v426
  %454 = vmatprep.subr.mxu0 0.0
  %455 = vmatpush1.msra.mxu0 %v427
  %456 = vmatprep.subr.mxu0 0.0
  %457 = vmatpush1.msra.mxu0 %v428
  %458 = vmatprep.subr.mxu0 0.0
  %459 = vmatpush1.msra.mxu0 %v429
  %460 = vmatprep.subr.mxu0 0.0
  %461 = vmatpush1.msra.mxu0 %v430
  %462 = vmatprep.subr.mxu0 0.0
  %463 = vmatpush1.msra.mxu0 %v431
  %464 = vmatprep.subr.mxu0 0.0
  %465 = vmatpush1.msra.mxu0 0.0
  %466 = vmatprep.subr.mxu0 0.0
  %467 = vmatpush1.msra.mxu0 0.0
  %468 = vmatprep.subr.mxu0 0.0
  %469 = vmatpush1.msra.mxu0 0.0
  %470 = vmatprep.subr.mxu0 0.0
  %471 = vmatpush1.msra.mxu0 0.0
  %472 = vmatprep.subr.mxu0 0.0
  %473 = vmatpush1.msra.mxu0 0.0
  %474 = vmatprep.subr.mxu0 0.0
  %475 = vmatpush1.msra.mxu0 0.0
  %476 = vmatprep.subr.mxu0 0.0
  %477 = vmatpush1.msra.mxu0 0.0
  %478 = vmatprep.subr.mxu0 0.0
  %479 = vmatpush1.msra.mxu0 0.0
  %480 = vmatprep.subr.mxu0 0.0
  %481 = vmatpush1.msra.mxu0 0.0
  %482 = vmatprep.subr.mxu0 0.0
  %483 = vmatpush1.msra.mxu0 0.0
  %484 = vmatprep.subr.mxu0 0.0
  %485 = vmatpush1.msra.mxu0 0.0
  %486 = vmatprep.subr.mxu0 0.0
  %487 = vmatpush1.msra.mxu0 0.0
  %488 = vmatprep.subr.mxu0 0.0
  %489 = vmatpush1.msra.mxu0 0.0
  %490 = vmatprep.subr.mxu0 0.0
  %491 = vmatpush1.msra.mxu0 0.0
  %492 = vmatprep.subr.mxu0 0.0
  %493 = vmatpush1.msra.mxu0 0.0
  %494 = vmatprep.subr.mxu0 0.0
  %495 = vmatpush1.msra.mxu0 0.0
  %496 = vmatprep.mubr.f32.mxu0 0.0
  %497 = vmatmul.mubr.f32.gmra.mrb[0].mxu0 %v414
  %v498 = vpop.f32.mrb[0].mxu0
  %v499 = vadd.f32 0.0, %v498
  %v500 = vpop.f32.mrb[0].mxu0
  %501 = vmatprep.mubr.f32.mxu0 0.0
  %502 = vmatmul.mubr.f32.gmra.mrb[0].mxu0 %v415
  %v503 = vpop.f32.mrb[0].mxu0
  %v504 = vadd.f32 0.0, %v503
  %v505 = vpop.f32.mrb[0].mxu0
  %506 = vdwg.mxu0
  %507 = vst.msk [vmem:[%s9] sm:$0xff] %vm214, %v499
  %508 = vst.msk [vmem:[%s9 + $0x8] sm:$0xff] %vm214, %v504
  // Predicated region
  $region38: #{quaternion_transformer_block.5} parent=0 // pred_check
    _
  $region39: #{quaternion_transformer_block.5} parent=0 // pred_check_branch
    %510 = sbr.rel (0) target = $region41
  $region40: #{quaternion_transformer_block.5} parent=0 // pred_region
    _
  $region41: #{quaternion_transformer_block.5} parent=0 // pred_fallthru
    _
  // Predicated region
  $region42: #{quaternion_transformer_block.5} parent=0 // pred_check
    _
  $region43: #{quaternion_transformer_block.5} parent=0 // pred_check_branch
    %512 = sbr.rel (0) target = $region45
  $region44: #{quaternion_transformer_block.5} parent=0 // pred_region
    _
  $region45: #{quaternion_transformer_block.5} parent=0 // pred_fallthru
    _

</llo_original>
